<compile_context>
chip_gen: v5e
topology: v5e:2x2
jax: 0.10.0
libtpu: 0.0.40
codegen_flags: <defaults>
</compile_context>

<pallas_src>
import functools

import numpy as np
import jax
import jax.numpy as jnp
from jax.experimental import pallas as pl
from jax.experimental.pallas import tpu as pltpu

DELTA = 1e-6
INV = float(np.log(np.exp(1.0 - DELTA) - 1.0))      # softplus^{-1}(1 - delta)
LOG1MDELTA = float(np.log(1.0 - DELTA))
EXP_M2DELTA = float(np.exp(-2.0 * DELTA))

LANE_CHUNK = 512     # in-kernel working-set chunk (multiple of 128)
MAX_TILE = 2048      # max lanes per grid step (DMA tile width)


def _round_up(v, m):
    return (v + m - 1) // m * m


# ----------------------------------------------------------------------------
# In-kernel helpers
# ----------------------------------------------------------------------------
def _softplus(z):
    """Numerically stable softplus (one exp + one log)."""
    return jnp.maximum(z, 0.0) + jnp.log(1.0 + jnp.exp(-jnp.abs(z)))


def _vpu_matmul(mat, rows):
    """(M, K) @ (K, Nc) with tiny K, M: unrolled broadcast multiply-adds."""
    k_dim = mat.shape[1]
    acc = mat[:, 0:1] * rows[0:1, :]
    for k in range(1, k_dim):
        acc = acc + mat[:, k:k + 1] * rows[k:k + 1, :]
    return acc


def _dsf_block(x_in, l_prev, a_raw, b, w_off, u_off, ehu, ehw):
    """One DenseSigmoidFlow block on a lane-major (rows, Nc) chunk.

    x_in  : (1 or I, Nc) block input
    l_prev: (I, Nc) running log-Jacobian column (None for the first block)
    a_raw, b, w_off : (H, Nc) per-element conditioner params
    u_off : (I, Nc) per-element conditioner params (None when I == 1)
    ehu   : (H, I)  exp(u_ - rowmax(u_))   (x-independent, precomputed)
    ehw   : (O, H)  exp(w_ - rowmax(w_))   (x-independent, precomputed)
    Returns x_new (O, Nc), l_new (O, Nc).
    """
    in_dim = ehu.shape[1]
    a = _softplus(a_raw + INV)                               # (H, Nc)

    if in_dim == 1:
        # softmax over a singleton input dim is the identity.
        xu = x_in                                            # (1, Nc) -> bcast
        inv_du = None
        mu = None
    else:
        mu = jnp.max(u_off, axis=0, keepdims=True)           # (1, Nc)
        eu = jnp.exp(u_off - mu)                             # (I, Nc)
        du = _vpu_matmul(ehu, eu)                            # (H, Nc)
        nu = _vpu_matmul(ehu, eu * x_in)                     # (H, Nc)
        inv_du = 1.0 / du
        xu = nu * inv_du                                     # sum_i softmax_u*x

    pre_sigm = a * xu + b                                    # (H, Nc)
    e = jnp.exp(-jnp.abs(pre_sigm))
    sigm = jnp.where(pre_sigm >= 0.0, 1.0, e) / (1.0 + e)    # sigmoid, 1 exp

    mw = jnp.max(w_off, axis=0, keepdims=True)               # (1, Nc)
    ew = jnp.exp(w_off - mw)                                 # (H, Nc)
    dw = _vpu_matmul(ehw, ew)                                # (O, Nc)
    nw = _vpu_matmul(ehw, ew * sigm)                         # (O, Nc)
    inv_dw = 1.0 / dw
    x_pre = nw * inv_dw

    xpc = x_pre * (1.0 - DELTA) + DELTA * 0.5
    log_xpc = jnp.log(xpc)
    log_1m_xpc = jnp.log(1.0 - xpc)
    x_new = log_xpc - log_1m_xpc                             # (O, Nc)

    # Fused log|detJ| chaining:
    #   l_new[o] = LSE_{h,i}( lsm_w[o,h] + c[h] + lsm_u[h,i] + l_prev[i] )
    #              + log(1-delta) - log(xpc[o]) - log(1-xpc[o])
    # with c = log(a) + logsigmoid(z) + logsigmoid(-z) - 2*delta, so
    #   exp(w_off - mw + c) = ew * a * sigm * (1 - sigm) * exp(-2*delta)
    # (pure multiplies).  The softmax normalizers 1/du, 1/dw are reused, so a
    # single log per output row remains.  Note: if every h saturates the
    # sigmoid (|pre_sigm| > ~85) eg underflows and l_new -> -inf (true value is
    # a large negative number); not reachable for realistic inputs.
    eg = ew * (a * EXP_M2DELTA) * (sigm * (1.0 - sigm))      # (H, Nc)

    if in_dim == 1:
        q = _vpu_matmul(ehw, eg)                             # (O, Nc)
        l_new = jnp.log(q * inv_dw) + LOG1MDELTA - (log_xpc + log_1m_xpc)
        if l_prev is not None:
            l_new = l_new + l_prev[0:1, :]
    else:
        r = u_off if l_prev is None else u_off + l_prev      # (I, Nc)
        mr = jnp.max(r, axis=0, keepdims=True)               # (1, Nc)
        er = jnp.exp(r - mr)                                 # (I, Nc)
        p = _vpu_matmul(ehu, er)                             # (H, Nc)
        q = _vpu_matmul(ehw, eg * inv_du * p)                # (O, Nc)
        l_new = (jnp.log(q * inv_dw) + (mr - mu)
                 + LOG1MDELTA - (log_xpc + log_1m_xpc))      # (O, Nc)
    return x_new, l_new


def _ddsf_kernel(*refs, meta, chunk, n_chunks):
    n_blocks = len(meta)
    x_ref = refs[0]
    p_ref = refs[1]
    mat_refs = refs[2:2 + 2 * n_blocks]
    out_x_ref = refs[2 + 2 * n_blocks]
    out_ld_ref = refs[3 + 2 * n_blocks]

    # Tiny (<= H x H) learned-matrix exps: load once, reuse for every chunk.
    mats = [m[...] for m in mat_refs]

    # Static inner loop over lane chunks: bounds the per-chunk vreg working
    # set at wide DMA tiles while keeping every Ref slice static (no dynamic
    # lane-offset loads), so it lowers on all TPU generations.
    for c in range(n_chunks):
        off = c * chunk
        lanes = slice(off, off + chunk)
        x = x_ref[:, lanes]                                  # (1, chunk)
        l = None
        for k, (i_k, h_k, _o_k, r_a, r_b, r_w, r_u) in enumerate(meta):
            a_raw = p_ref[r_a:r_a + h_k, lanes]
            b = p_ref[r_b:r_b + h_k, lanes]
            w_off = p_ref[r_w:r_w + h_k, lanes]
            u_off = p_ref[r_u:r_u + i_k, lanes] if r_u is not None else None
            x, l = _dsf_block(x, l, a_raw, b, w_off, u_off,
                              mats[2 * k], mats[2 * k + 1])
        out_x_ref[:, lanes] = x
        out_ld_ref[:, lanes] = l[0:1, :]                     # _logdet[:,:,0,0]


# ----------------------------------------------------------------------------
# Wrapper: DDSF.forward(x, dsparams) -> (x_out, logdet)
# ----------------------------------------------------------------------------
def ddsf_forward(x, dsparams, u_mats, w_mats, *, n_tile=None):
    """x: (B, D) f32; dsparams: (B, D, sum_k(3*H_k + I_k)); u_mats[k]: (H_k, I_k);
    w_mats[k]: (O_k, H_k).  Returns (x_out (B, D) for out_dim==1, logdet (B,))."""
    B, D = x.shape
    dims = [(int(u.shape[1]), int(u.shape[0]), int(w.shape[0]))
            for u, w in zip(u_mats, w_mats)]
    n = B * D

    if n_tile is None:
        # Wide DMA tiles, but keep >= 2 grid steps so both v7x TCs get work.
        n_tile = min(MAX_TILE, _round_up(max(pl.cdiv(n, 2), 1), 128))
        if n_tile > LANE_CHUNK:
            n_tile = _round_up(n_tile, LANE_CHUNK)
    assert n_tile % 128 == 0
    chunk = n_tile
    if n_tile > LANE_CHUNK and n_tile % LANE_CHUNK == 0:
        chunk = LANE_CHUNK
    n_chunks = n_tile // chunk
    n_pad = _round_up(n, n_tile)

    # ---- single transposed parameter slab: (P_pad rows, n_pad lanes) -------
    ds2 = dsparams.reshape(n, -1)
    pieces, meta = [], []
    row_off = 0
    start = 0

    def _add(cols):                       # (n, c) -> slab rows, 8-aligned
        nonlocal row_off
        c = cols.shape[1]
        c_pad = _round_up(c, 8)
        if c_pad != c:
            cols = jnp.pad(cols, ((0, 0), (0, c_pad - c)))
        pieces.append(cols)
        off = row_off
        row_off += c_pad
        return off

    for (i_k, h_k, o_k) in dims:
        npar = 3 * h_k + i_k
        blk = ds2[:, start:start + npar]
        start += npar
        r_a = _add(blk[:, 0:h_k])
        r_b = _add(blk[:, h_k:2 * h_k])
        r_w = _add(blk[:, 2 * h_k:3 * h_k])
        # u_off is mathematically unused when in_dim == 1 (softmax of a
        # singleton), so skip it from the slab entirely.
        r_u = _add(blk[:, 3 * h_k:3 * h_k + i_k]) if i_k > 1 else None
        meta.append((i_k, h_k, o_k, r_a, r_b, r_w, r_u))

    p_cols = jnp.concatenate(pieces, axis=1) if len(pieces) > 1 else pieces[0]
    p_rows = row_off
    params = jnp.pad(p_cols.T.astype(jnp.float32), ((0, 0), (0, n_pad - n)))

    x_row = jnp.pad(x.reshape(1, n).astype(jnp.float32),
                    ((0, 0), (0, n_pad - n)))

    # x-independent exps of the learned mixing matrices (hoisted), with the
    # row max subtracted so large trained u_/w_ cannot overflow in-kernel.
    mats = []
    for u_, w_ in zip(u_mats, w_mats):
        ehu = jnp.exp(u_ - jnp.max(u_, axis=1, keepdims=True)).astype(jnp.float32)
        ehw = jnp.exp(w_ - jnp.max(w_, axis=1, keepdims=True)).astype(jnp.float32)
        mats += [ehu, ehw]

    o_last = dims[-1][2]
    grid = (n_pad // n_tile,)

    in_specs = [pl.BlockSpec((1, n_tile), lambda i: (0, i)),
                pl.BlockSpec((p_rows, n_tile), lambda i: (0, i))]
    for (i_k, h_k, o_k) in dims:
        in_specs += [pl.BlockSpec((h_k, i_k), lambda i: (0, 0)),
                     pl.BlockSpec((o_k, h_k), lambda i: (0, 0))]

    kernel = functools.partial(_ddsf_kernel, meta=tuple(meta),
                               chunk=chunk, n_chunks=n_chunks)
    x_out, ld = pl.pallas_call(
        kernel,
        grid=grid,
        out_shape=(jax.ShapeDtypeStruct((o_last, n_pad), jnp.float32),
                   jax.ShapeDtypeStruct((1, n_pad), jnp.float32)),
        in_specs=in_specs,
        out_specs=(pl.BlockSpec((o_last, n_tile), lambda i: (0, i)),
                   pl.BlockSpec((1, n_tile), lambda i: (0, i))),
        compiler_params=pltpu.CompilerParams(
            dimension_semantics=("parallel",)),
    )(x_row, params, *mats)

    logdet = jnp.sum(ld[0, :n].reshape(B, D), axis=1)        # tiny, done in XLA
    if o_last == 1:
        x_res = x_out[0, :n].reshape(B, D)
    else:
        x_res = x_out[:, :n].T.reshape(B, D, o_last)
    return x_res, logdet


# ----------------------------------------------------------------------------
# Pure-JAX reference mirroring the PyTorch DenseSigmoidFlow / DDSF forward
# ----------------------------------------------------------------------------
def _dense_sigmoid_flow_ref(x, dsparams, u_, w_, logdet=None):
    if x.ndim == 2:
        x = x[..., None]
    in_dim = u_.shape[1]
    hidden = u_.shape[0]
    out_dim = w_.shape[0]
    pre_u = u_[None, None] + dsparams[:, :, -in_dim:][:, :, None, :]
    pre_w = w_[None, None] + dsparams[:, :, 2 * hidden:3 * hidden][:, :, None, :]
    a = jax.nn.softplus(dsparams[:, :, 0:hidden] + INV)
    b = dsparams[:, :, hidden:2 * hidden]
    w = jax.nn.softmax(pre_w, axis=3)
    u = jax.nn.softmax(pre_u, axis=3)
    pre_sigm = jnp.sum(u * a[:, :, :, None] * x[:, :, None, :], axis=3) + b
    sigm = jax.nn.sigmoid(pre_sigm)
    x_pre = jnp.sum(w * sigm[:, :, None, :], axis=3)
    x_pre_clipped = x_pre * (1 - DELTA) + DELTA * 0.5
    xnew = jnp.log(x_pre_clipped) - jnp.log(1 - x_pre_clipped)
    logsig = lambda z: -(jax.nn.softplus(-z) + DELTA)
    logj = (jax.nn.log_softmax(pre_w, axis=3)
            + logsig(pre_sigm)[:, :, None, :]
            + logsig(-pre_sigm)[:, :, None, :]
            + jnp.log(a)[:, :, None, :])
    logj = logj[:, :, :, :, None] + \
        jax.nn.log_softmax(pre_u, axis=3)[:, :, None, :, :]
    logj = jax.scipy.special.logsumexp(logj, axis=3)          # (B,D,O,I)
    logdet_ = (logj + np.log(1 - DELTA)
               - (jnp.log(x_pre_clipped)
                  + jnp.log(1 - x_pre_clipped))[:, :, :, None])
    if logdet is None:
        logdet = jnp.zeros(logdet_.shape[:2] + (1, 1), logdet_.dtype)
    logdet = jax.scipy.special.logsumexp(
        logdet_[:, :, :, :, None] + logdet[:, :, None, :, :], axis=3)
    if out_dim == 1:
        xnew = xnew[..., 0]
    return xnew, logdet


def ddsf_reference(x, dsparams, u_mats, w_mats):
    start = 0
    logdet = None
    cur = x
    for u_, w_ in zip(u_mats, w_mats):
        h, i = u_.shape
        npar = 3 * h + i
        cur, logdet = _dense_sigmoid_flow_ref(
            cur, dsparams[:, :, start:start + npar], u_, w_, logdet)
        start += npar
    return cur, logdet[:, :, 0, 0].sum(axis=1)


def _make_inputs(key, n_layers, in_dim, hidden_dim, out_dim, B, D):
    dims = [(in_dim, hidden_dim, hidden_dim)]
    dims += [(hidden_dim, hidden_dim, hidden_dim)] * (n_layers - 2)
    dims += [(hidden_dim, hidden_dim, out_dim)]
    num_params = sum(3 * h + i for (i, h, o) in dims)
    keys = jax.random.split(key, 2 * n_layers + 2)
    u_mats, w_mats = [], []
    for bi, (i_k, h_k, o_k) in enumerate(dims):
        u_mats.append(jax.random.uniform(keys[2 * bi], (h_k, i_k), jnp.float32,
                                         minval=-1e-3, maxval=1e-3))
        w_mats.append(jax.random.uniform(keys[2 * bi + 1], (o_k, h_k),
                                         jnp.float32, minval=-1e-3, maxval=1e-3))
    x = jax.random.normal(keys[-2], (B, D), jnp.float32)
    dsparams = 0.8 * jax.random.normal(keys[-1], (B, D, num_params), jnp.float32)
    return x, dsparams, u_mats, w_mats


if __name__ == "__main__":
    # DDSF(n_layers=3, in_dim=1, hidden_dim=8, out_dim=1)
    key = jax.random.PRNGKey(0)
    k1, k2 = jax.random.split(key)

    # Case 1: small (single-chunk, 2-step grid) — matches the module's spec.
    x, dsparams, u_mats, w_mats = _make_inputs(k1, 3, 1, 8, 1, B=40, D=4)
    x_out, logdet = ddsf_forward(x, dsparams, u_mats, w_mats)
    jax.block_until_ready((x_out, logdet))
    x_ref, ld_ref = ddsf_reference(x, dsparams, u_mats, w_mats)
    np.testing.assert_allclose(np.asarray(x_out), np.asarray(x_ref),
                               rtol=5e-4, atol=5e-4)
    np.testing.assert_allclose(np.asarray(logdet), np.asarray(ld_ref),
                               rtol=5e-4, atol=5e-4)

    # Case 2: larger N so the wide-tile + in-kernel lane-chunk path is used
    # (n_tile=1024, 2 chunks per tile, 2 grid steps).
    x2, dsparams2, u_mats2, w_mats2 = _make_inputs(k2, 3, 1, 8, 1, B=64, D=32)
    x_out2, logdet2 = ddsf_forward(x2, dsparams2, u_mats2, w_mats2)
    jax.block_until_ready((x_out2, logdet2))
    x_ref2, ld_ref2 = ddsf_reference(x2, dsparams2, u_mats2, w_mats2)
    np.testing.assert_allclose(np.asarray(x_out2), np.asarray(x_ref2),
                               rtol=5e-4, atol=5e-4)
    np.testing.assert_allclose(np.asarray(logdet2), np.asarray(ld_ref2),
                               rtol=5e-4, atol=5e-4)

    print("KERNEL_OK")
</pallas_src>

<mosaic_0001>
module attributes {stable_mosaic.version = 11 : i64} {
  func.func @_ddsf_kernel(%arg0: i32, %arg1: memref<1x128xf32, #tpu.memory_space<vmem>>, %arg2: memref<88x128xf32, #tpu.memory_space<vmem>>, %arg3: memref<8x1xf32, #tpu.memory_space<vmem>>, %arg4: memref<8x8xf32, #tpu.memory_space<vmem>>, %arg5: memref<8x8xf32, #tpu.memory_space<vmem>>, %arg6: memref<8x8xf32, #tpu.memory_space<vmem>>, %arg7: memref<8x8xf32, #tpu.memory_space<vmem>>, %arg8: memref<1x8xf32, #tpu.memory_space<vmem>>, %arg9: memref<1x128xf32, #tpu.memory_space<vmem>>, %arg10: memref<1x128xf32, #tpu.memory_space<vmem>>) attributes {dimension_semantics = [#tpu.dimension_semantics<parallel>], iteration_bounds = array<i64: 2>, scalar_prefetch = 0 : i64, scratch_operands = 0 : i64, tpu.core_type = #tpu.core_type<tc>, window_params = [{transform_indices = @transform_0, window_bounds = array<i64: 1, 128>}, {transform_indices = @transform_1, window_bounds = array<i64: 88, 128>}, {pipeline_mode = #tpu.pipeline_mode<synchronous>, transform_indices = @transform_2, window_bounds = array<i64: 8, 1>}, {pipeline_mode = #tpu.pipeline_mode<synchronous>, transform_indices = @transform_3, window_bounds = array<i64: 8, 8>}, {pipeline_mode = #tpu.pipeline_mode<synchronous>, transform_indices = @transform_4, window_bounds = array<i64: 8, 8>}, {pipeline_mode = #tpu.pipeline_mode<synchronous>, transform_indices = @transform_5, window_bounds = array<i64: 8, 8>}, {pipeline_mode = #tpu.pipeline_mode<synchronous>, transform_indices = @transform_6, window_bounds = array<i64: 8, 8>}, {pipeline_mode = #tpu.pipeline_mode<synchronous>, transform_indices = @transform_7, window_bounds = array<i64: 1, 8>}, {transform_indices = @transform_8, window_bounds = array<i64: 1, 128>}, {transform_indices = @transform_9, window_bounds = array<i64: 1, 128>}]} {
    %c0 = arith.constant 0 : index
    %c0_0 = arith.constant 0 : index
    %0 = vector.load %arg4[%c0, %c0_0] : memref<8x8xf32, #tpu.memory_space<vmem>>, vector<8x8xf32>
    %c0_1 = arith.constant 0 : index
    %c0_2 = arith.constant 0 : index
    %1 = vector.load %arg5[%c0_1, %c0_2] : memref<8x8xf32, #tpu.memory_space<vmem>>, vector<8x8xf32>
    %c0_3 = arith.constant 0 : index
    %c0_4 = arith.constant 0 : index
    %2 = vector.load %arg6[%c0_3, %c0_4] : memref<8x8xf32, #tpu.memory_space<vmem>>, vector<8x8xf32>
    %c0_5 = arith.constant 0 : index
    %c0_6 = arith.constant 0 : index
    %3 = vector.load %arg7[%c0_5, %c0_6] : memref<8x8xf32, #tpu.memory_space<vmem>>, vector<8x8xf32>
    %c0_7 = arith.constant 0 : index
    %c0_8 = arith.constant 0 : index
    %4 = vector.load %arg8[%c0_7, %c0_8] : memref<1x8xf32, #tpu.memory_space<vmem>>, vector<1x8xf32>
    %c0_9 = arith.constant 0 : index
    %c0_10 = arith.constant 0 : index
    %5 = vector.load %arg1[%c0_9, %c0_10] : memref<1x128xf32, #tpu.memory_space<vmem>>, vector<1x128xf32>
    %c0_11 = arith.constant 0 : index
    %c0_12 = arith.constant 0 : index
    %6 = vector.load %arg2[%c0_11, %c0_12] : memref<88x128xf32, #tpu.memory_space<vmem>>, vector<8x128xf32>
    %c8 = arith.constant 8 : index
    %c0_13 = arith.constant 0 : index
    %7 = vector.load %arg2[%c8, %c0_13] : memref<88x128xf32, #tpu.memory_space<vmem>>, vector<8x128xf32>
    %c16 = arith.constant 16 : index
    %c0_14 = arith.constant 0 : index
    %8 = vector.load %arg2[%c16, %c0_14] : memref<88x128xf32, #tpu.memory_space<vmem>>, vector<8x128xf32>
    %cst = arith.constant 0.541323245 : f32
    %9 = vector.broadcast %cst : f32 to vector<8x128xf32>
    %10 = arith.addf %6, %9 : vector<8x128xf32>
    %cst_15 = arith.constant 0.000000e+00 : f32
    %11 = vector.broadcast %cst_15 : f32 to vector<8x128xf32>
    %12 = arith.maximumf %10, %11 : vector<8x128xf32>
    %13 = math.absf %10 : vector<8x128xf32>
    %cst_16 = arith.constant 0.000000e+00 : f32
    %14 = vector.broadcast %cst_16 : f32 to vector<8x128xf32>
    %15 = arith.subf %14, %13 : vector<8x128xf32>
    %16 = math.exp %15 : vector<8x128xf32>
    %cst_17 = arith.constant 1.000000e+00 : f32
    %17 = vector.broadcast %cst_17 : f32 to vector<8x128xf32>
    %18 = arith.addf %17, %16 : vector<8x128xf32>
    %19 = math.log %18 : vector<8x128xf32>
    %20 = arith.addf %12, %19 : vector<8x128xf32>
    %21 = vector.broadcast %5 : vector<1x128xf32> to vector<8x128xf32>
    %22 = arith.mulf %20, %21 : vector<8x128xf32>
    %23 = arith.addf %22, %7 : vector<8x128xf32>
    %24 = math.absf %23 : vector<8x128xf32>
    %cst_18 = arith.constant 0.000000e+00 : f32
    %25 = vector.broadcast %cst_18 : f32 to vector<8x128xf32>
    %26 = arith.subf %25, %24 : vector<8x128xf32>
    %27 = math.exp %26 : vector<8x128xf32>
    %cst_19 = arith.constant 0.000000e+00 : f32
    %28 = vector.broadcast %cst_19 : f32 to vector<8x128xf32>
    %29 = arith.cmpf oge, %23, %28 : vector<8x128xf32>
    %cst_20 = arith.constant 1.000000e+00 : f32
    %30 = vector.broadcast %cst_20 : f32 to vector<8x128xf32>
    %31 = arith.select %29, %30, %27 : vector<8x128xi1>, vector<8x128xf32>
    %cst_21 = arith.constant 1.000000e+00 : f32
    %32 = vector.broadcast %cst_21 : f32 to vector<8x128xf32>
    %33 = arith.addf %32, %27 : vector<8x128xf32>
    %34 = arith.divf %31, %33 : vector<8x128xf32>
    %cst_22 = arith.constant dense<0xFF800000> : vector<128xf32>
    %35 = vector.multi_reduction <maximumf>, %8, %cst_22 [0] : vector<8x128xf32> to vector<128xf32>
    %36 = vector.shape_cast %35 : vector<128xf32> to vector<1x128xf32>
    %37 = vector.broadcast %36 : vector<1x128xf32> to vector<8x128xf32>
    %38 = arith.subf %8, %37 : vector<8x128xf32>
    %39 = math.exp %38 : vector<8x128xf32>
    %40 = vector.extract_strided_slice %0 {offsets = [0, 0], sizes = [8, 1], strides = [1, 1]} : vector<8x8xf32> to vector<8x1xf32>
    %41 = vector.extract_strided_slice %39 {offsets = [0, 0], sizes = [1, 128], strides = [1, 1]} : vector<8x128xf32> to vector<1x128xf32>
    %42 = vector.broadcast %40 : vector<8x1xf32> to vector<8x128xf32>
    %43 = vector.broadcast %41 : vector<1x128xf32> to vector<8x128xf32>
    %44 = arith.mulf %42, %43 : vector<8x128xf32>
    %45 = vector.extract_strided_slice %0 {offsets = [0, 1], sizes = [8, 1], strides = [1, 1]} : vector<8x8xf32> to vector<8x1xf32>
    %46 = vector.extract_strided_slice %39 {offsets = [1, 0], sizes = [1, 128], strides = [1, 1]} : vector<8x128xf32> to vector<1x128xf32>
    %47 = vector.broadcast %45 : vector<8x1xf32> to vector<8x128xf32>
    %48 = vector.broadcast %46 : vector<1x128xf32> to vector<8x128xf32>
    %49 = arith.mulf %47, %48 : vector<8x128xf32>
    %50 = arith.addf %44, %49 : vector<8x128xf32>
    %51 = vector.extract_strided_slice %0 {offsets = [0, 2], sizes = [8, 1], strides = [1, 1]} : vector<8x8xf32> to vector<8x1xf32>
    %52 = vector.extract_strided_slice %39 {offsets = [2, 0], sizes = [1, 128], strides = [1, 1]} : vector<8x128xf32> to vector<1x128xf32>
    %53 = vector.broadcast %51 : vector<8x1xf32> to vector<8x128xf32>
    %54 = vector.broadcast %52 : vector<1x128xf32> to vector<8x128xf32>
    %55 = arith.mulf %53, %54 : vector<8x128xf32>
    %56 = arith.addf %50, %55 : vector<8x128xf32>
    %57 = vector.extract_strided_slice %0 {offsets = [0, 3], sizes = [8, 1], strides = [1, 1]} : vector<8x8xf32> to vector<8x1xf32>
    %58 = vector.extract_strided_slice %39 {offsets = [3, 0], sizes = [1, 128], strides = [1, 1]} : vector<8x128xf32> to vector<1x128xf32>
    %59 = vector.broadcast %57 : vector<8x1xf32> to vector<8x128xf32>
    %60 = vector.broadcast %58 : vector<1x128xf32> to vector<8x128xf32>
    %61 = arith.mulf %59, %60 : vector<8x128xf32>
    %62 = arith.addf %56, %61 : vector<8x128xf32>
    %63 = vector.extract_strided_slice %0 {offsets = [0, 4], sizes = [8, 1], strides = [1, 1]} : vector<8x8xf32> to vector<8x1xf32>
    %64 = vector.extract_strided_slice %39 {offsets = [4, 0], sizes = [1, 128], strides = [1, 1]} : vector<8x128xf32> to vector<1x128xf32>
    %65 = vector.broadcast %63 : vector<8x1xf32> to vector<8x128xf32>
    %66 = vector.broadcast %64 : vector<1x128xf32> to vector<8x128xf32>
    %67 = arith.mulf %65, %66 : vector<8x128xf32>
    %68 = arith.addf %62, %67 : vector<8x128xf32>
    %69 = vector.extract_strided_slice %0 {offsets = [0, 5], sizes = [8, 1], strides = [1, 1]} : vector<8x8xf32> to vector<8x1xf32>
    %70 = vector.extract_strided_slice %39 {offsets = [5, 0], sizes = [1, 128], strides = [1, 1]} : vector<8x128xf32> to vector<1x128xf32>
    %71 = vector.broadcast %69 : vector<8x1xf32> to vector<8x128xf32>
    %72 = vector.broadcast %70 : vector<1x128xf32> to vector<8x128xf32>
    %73 = arith.mulf %71, %72 : vector<8x128xf32>
    %74 = arith.addf %68, %73 : vector<8x128xf32>
    %75 = vector.extract_strided_slice %0 {offsets = [0, 6], sizes = [8, 1], strides = [1, 1]} : vector<8x8xf32> to vector<8x1xf32>
    %76 = vector.extract_strided_slice %39 {offsets = [6, 0], sizes = [1, 128], strides = [1, 1]} : vector<8x128xf32> to vector<1x128xf32>
    %77 = vector.broadcast %75 : vector<8x1xf32> to vector<8x128xf32>
    %78 = vector.broadcast %76 : vector<1x128xf32> to vector<8x128xf32>
    %79 = arith.mulf %77, %78 : vector<8x128xf32>
    %80 = arith.addf %74, %79 : vector<8x128xf32>
    %81 = vector.extract_strided_slice %0 {offsets = [0, 7], sizes = [8, 1], strides = [1, 1]} : vector<8x8xf32> to vector<8x1xf32>
    %82 = vector.extract_strided_slice %39 {offsets = [7, 0], sizes = [1, 128], strides = [1, 1]} : vector<8x128xf32> to vector<1x128xf32>
    %83 = vector.broadcast %81 : vector<8x1xf32> to vector<8x128xf32>
    %84 = vector.broadcast %82 : vector<1x128xf32> to vector<8x128xf32>
    %85 = arith.mulf %83, %84 : vector<8x128xf32>
    %86 = arith.addf %80, %85 : vector<8x128xf32>
    %87 = arith.mulf %39, %34 : vector<8x128xf32>
    %88 = vector.extract_strided_slice %0 {offsets = [0, 0], sizes = [8, 1], strides = [1, 1]} : vector<8x8xf32> to vector<8x1xf32>
    %89 = vector.extract_strided_slice %87 {offsets = [0, 0], sizes = [1, 128], strides = [1, 1]} : vector<8x128xf32> to vector<1x128xf32>
    %90 = vector.broadcast %88 : vector<8x1xf32> to vector<8x128xf32>
    %91 = vector.broadcast %89 : vector<1x128xf32> to vector<8x128xf32>
    %92 = arith.mulf %90, %91 : vector<8x128xf32>
    %93 = vector.extract_strided_slice %0 {offsets = [0, 1], sizes = [8, 1], strides = [1, 1]} : vector<8x8xf32> to vector<8x1xf32>
    %94 = vector.extract_strided_slice %87 {offsets = [1, 0], sizes = [1, 128], strides = [1, 1]} : vector<8x128xf32> to vector<1x128xf32>
    %95 = vector.broadcast %93 : vector<8x1xf32> to vector<8x128xf32>
    %96 = vector.broadcast %94 : vector<1x128xf32> to vector<8x128xf32>
    %97 = arith.mulf %95, %96 : vector<8x128xf32>
    %98 = arith.addf %92, %97 : vector<8x128xf32>
    %99 = vector.extract_strided_slice %0 {offsets = [0, 2], sizes = [8, 1], strides = [1, 1]} : vector<8x8xf32> to vector<8x1xf32>
    %100 = vector.extract_strided_slice %87 {offsets = [2, 0], sizes = [1, 128], strides = [1, 1]} : vector<8x128xf32> to vector<1x128xf32>
    %101 = vector.broadcast %99 : vector<8x1xf32> to vector<8x128xf32>
    %102 = vector.broadcast %100 : vector<1x128xf32> to vector<8x128xf32>
    %103 = arith.mulf %101, %102 : vector<8x128xf32>
    %104 = arith.addf %98, %103 : vector<8x128xf32>
    %105 = vector.extract_strided_slice %0 {offsets = [0, 3], sizes = [8, 1], strides = [1, 1]} : vector<8x8xf32> to vector<8x1xf32>
    %106 = vector.extract_strided_slice %87 {offsets = [3, 0], sizes = [1, 128], strides = [1, 1]} : vector<8x128xf32> to vector<1x128xf32>
    %107 = vector.broadcast %105 : vector<8x1xf32> to vector<8x128xf32>
    %108 = vector.broadcast %106 : vector<1x128xf32> to vector<8x128xf32>
    %109 = arith.mulf %107, %108 : vector<8x128xf32>
    %110 = arith.addf %104, %109 : vector<8x128xf32>
    %111 = vector.extract_strided_slice %0 {offsets = [0, 4], sizes = [8, 1], strides = [1, 1]} : vector<8x8xf32> to vector<8x1xf32>
    %112 = vector.extract_strided_slice %87 {offsets = [4, 0], sizes = [1, 128], strides = [1, 1]} : vector<8x128xf32> to vector<1x128xf32>
    %113 = vector.broadcast %111 : vector<8x1xf32> to vector<8x128xf32>
    %114 = vector.broadcast %112 : vector<1x128xf32> to vector<8x128xf32>
    %115 = arith.mulf %113, %114 : vector<8x128xf32>
    %116 = arith.addf %110, %115 : vector<8x128xf32>
    %117 = vector.extract_strided_slice %0 {offsets = [0, 5], sizes = [8, 1], strides = [1, 1]} : vector<8x8xf32> to vector<8x1xf32>
    %118 = vector.extract_strided_slice %87 {offsets = [5, 0], sizes = [1, 128], strides = [1, 1]} : vector<8x128xf32> to vector<1x128xf32>
    %119 = vector.broadcast %117 : vector<8x1xf32> to vector<8x128xf32>
    %120 = vector.broadcast %118 : vector<1x128xf32> to vector<8x128xf32>
    %121 = arith.mulf %119, %120 : vector<8x128xf32>
    %122 = arith.addf %116, %121 : vector<8x128xf32>
    %123 = vector.extract_strided_slice %0 {offsets = [0, 6], sizes = [8, 1], strides = [1, 1]} : vector<8x8xf32> to vector<8x1xf32>
    %124 = vector.extract_strided_slice %87 {offsets = [6, 0], sizes = [1, 128], strides = [1, 1]} : vector<8x128xf32> to vector<1x128xf32>
    %125 = vector.broadcast %123 : vector<8x1xf32> to vector<8x128xf32>
    %126 = vector.broadcast %124 : vector<1x128xf32> to vector<8x128xf32>
    %127 = arith.mulf %125, %126 : vector<8x128xf32>
    %128 = arith.addf %122, %127 : vector<8x128xf32>
    %129 = vector.extract_strided_slice %0 {offsets = [0, 7], sizes = [8, 1], strides = [1, 1]} : vector<8x8xf32> to vector<8x1xf32>
    %130 = vector.extract_strided_slice %87 {offsets = [7, 0], sizes = [1, 128], strides = [1, 1]} : vector<8x128xf32> to vector<1x128xf32>
    %131 = vector.broadcast %129 : vector<8x1xf32> to vector<8x128xf32>
    %132 = vector.broadcast %130 : vector<1x128xf32> to vector<8x128xf32>
    %133 = arith.mulf %131, %132 : vector<8x128xf32>
    %134 = arith.addf %128, %133 : vector<8x128xf32>
    %cst_23 = arith.constant 1.000000e+00 : f32
    %135 = vector.broadcast %cst_23 : f32 to vector<8x128xf32>
    %136 = arith.divf %135, %86 : vector<8x128xf32>
    %137 = arith.mulf %134, %136 : vector<8x128xf32>
    %cst_24 = arith.constant 0.999998986 : f32
    %138 = vector.broadcast %cst_24 : f32 to vector<8x128xf32>
    %139 = arith.mulf %137, %138 : vector<8x128xf32>
    %cst_25 = arith.constant 5.000000e-07 : f32
    %140 = vector.broadcast %cst_25 : f32 to vector<8x128xf32>
    %141 = arith.addf %139, %140 : vector<8x128xf32>
    %142 = math.log %141 : vector<8x128xf32>
    %cst_26 = arith.constant 1.000000e+00 : f32
    %143 = vector.broadcast %cst_26 : f32 to vector<8x128xf32>
    %144 = arith.subf %143, %141 : vector<8x128xf32>
    %145 = math.log %144 : vector<8x128xf32>
    %146 = arith.subf %142, %145 : vector<8x128xf32>
    %cst_27 = arith.constant 0.999997973 : f32
    %147 = vector.broadcast %cst_27 : f32 to vector<8x128xf32>
    %148 = arith.mulf %20, %147 : vector<8x128xf32>
    %149 = arith.mulf %39, %148 : vector<8x128xf32>
    %cst_28 = arith.constant 1.000000e+00 : f32
    %150 = vector.broadcast %cst_28 : f32 to vector<8x128xf32>
    %151 = arith.subf %150, %34 : vector<8x128xf32>
    %152 = arith.mulf %34, %151 : vector<8x128xf32>
    %153 = arith.mulf %149, %152 : vector<8x128xf32>
    %154 = vector.extract_strided_slice %0 {offsets = [0, 0], sizes = [8, 1], strides = [1, 1]} : vector<8x8xf32> to vector<8x1xf32>
    %155 = vector.extract_strided_slice %153 {offsets = [0, 0], sizes = [1, 128], strides = [1, 1]} : vector<8x128xf32> to vector<1x128xf32>
    %156 = vector.broadcast %154 : vector<8x1xf32> to vector<8x128xf32>
    %157 = vector.broadcast %155 : vector<1x128xf32> to vector<8x128xf32>
    %158 = arith.mulf %156, %157 : vector<8x128xf32>
    %159 = vector.extract_strided_slice %0 {offsets = [0, 1], sizes = [8, 1], strides = [1, 1]} : vector<8x8xf32> to vector<8x1xf32>
    %160 = vector.extract_strided_slice %153 {offsets = [1, 0], sizes = [1, 128], strides = [1, 1]} : vector<8x128xf32> to vector<1x128xf32>
    %161 = vector.broadcast %159 : vector<8x1xf32> to vector<8x128xf32>
    %162 = vector.broadcast %160 : vector<1x128xf32> to vector<8x128xf32>
    %163 = arith.mulf %161, %162 : vector<8x128xf32>
    %164 = arith.addf %158, %163 : vector<8x128xf32>
    %165 = vector.extract_strided_slice %0 {offsets = [0, 2], sizes = [8, 1], strides = [1, 1]} : vector<8x8xf32> to vector<8x1xf32>
    %166 = vector.extract_strided_slice %153 {offsets = [2, 0], sizes = [1, 128], strides = [1, 1]} : vector<8x128xf32> to vector<1x128xf32>
    %167 = vector.broadcast %165 : vector<8x1xf32> to vector<8x128xf32>
    %168 = vector.broadcast %166 : vector<1x128xf32> to vector<8x128xf32>
    %169 = arith.mulf %167, %168 : vector<8x128xf32>
    %170 = arith.addf %164, %169 : vector<8x128xf32>
    %171 = vector.extract_strided_slice %0 {offsets = [0, 3], sizes = [8, 1], strides = [1, 1]} : vector<8x8xf32> to vector<8x1xf32>
    %172 = vector.extract_strided_slice %153 {offsets = [3, 0], sizes = [1, 128], strides = [1, 1]} : vector<8x128xf32> to vector<1x128xf32>
    %173 = vector.broadcast %171 : vector<8x1xf32> to vector<8x128xf32>
    %174 = vector.broadcast %172 : vector<1x128xf32> to vector<8x128xf32>
    %175 = arith.mulf %173, %174 : vector<8x128xf32>
    %176 = arith.addf %170, %175 : vector<8x128xf32>
    %177 = vector.extract_strided_slice %0 {offsets = [0, 4], sizes = [8, 1], strides = [1, 1]} : vector<8x8xf32> to vector<8x1xf32>
    %178 = vector.extract_strided_slice %153 {offsets = [4, 0], sizes = [1, 128], strides = [1, 1]} : vector<8x128xf32> to vector<1x128xf32>
    %179 = vector.broadcast %177 : vector<8x1xf32> to vector<8x128xf32>
    %180 = vector.broadcast %178 : vector<1x128xf32> to vector<8x128xf32>
    %181 = arith.mulf %179, %180 : vector<8x128xf32>
    %182 = arith.addf %176, %181 : vector<8x128xf32>
    %183 = vector.extract_strided_slice %0 {offsets = [0, 5], sizes = [8, 1], strides = [1, 1]} : vector<8x8xf32> to vector<8x1xf32>
    %184 = vector.extract_strided_slice %153 {offsets = [5, 0], sizes = [1, 128], strides = [1, 1]} : vector<8x128xf32> to vector<1x128xf32>
    %185 = vector.broadcast %183 : vector<8x1xf32> to vector<8x128xf32>
    %186 = vector.broadcast %184 : vector<1x128xf32> to vector<8x128xf32>
    %187 = arith.mulf %185, %186 : vector<8x128xf32>
    %188 = arith.addf %182, %187 : vector<8x128xf32>
    %189 = vector.extract_strided_slice %0 {offsets = [0, 6], sizes = [8, 1], strides = [1, 1]} : vector<8x8xf32> to vector<8x1xf32>
    %190 = vector.extract_strided_slice %153 {offsets = [6, 0], sizes = [1, 128], strides = [1, 1]} : vector<8x128xf32> to vector<1x128xf32>
    %191 = vector.broadcast %189 : vector<8x1xf32> to vector<8x128xf32>
    %192 = vector.broadcast %190 : vector<1x128xf32> to vector<8x128xf32>
    %193 = arith.mulf %191, %192 : vector<8x128xf32>
    %194 = arith.addf %188, %193 : vector<8x128xf32>
    %195 = vector.extract_strided_slice %0 {offsets = [0, 7], sizes = [8, 1], strides = [1, 1]} : vector<8x8xf32> to vector<8x1xf32>
    %196 = vector.extract_strided_slice %153 {offsets = [7, 0], sizes = [1, 128], strides = [1, 1]} : vector<8x128xf32> to vector<1x128xf32>
    %197 = vector.broadcast %195 : vector<8x1xf32> to vector<8x128xf32>
    %198 = vector.broadcast %196 : vector<1x128xf32> to vector<8x128xf32>
    %199 = arith.mulf %197, %198 : vector<8x128xf32>
    %200 = arith.addf %194, %199 : vector<8x128xf32>
    %201 = arith.mulf %200, %136 : vector<8x128xf32>
    %202 = math.log %201 : vector<8x128xf32>
    %cst_29 = arith.constant -1.00000045E-6 : f32
    %203 = vector.broadcast %cst_29 : f32 to vector<8x128xf32>
    %204 = arith.addf %202, %203 : vector<8x128xf32>
    %205 = arith.addf %142, %145 : vector<8x128xf32>
    %206 = arith.subf %204, %205 : vector<8x128xf32>
    %c24 = arith.constant 24 : index
    %c0_30 = arith.constant 0 : index
    %207 = vector.load %arg2[%c24, %c0_30] : memref<88x128xf32, #tpu.memory_space<vmem>>, vector<8x128xf32>
    %c32 = arith.constant 32 : index
    %c0_31 = arith.constant 0 : index
    %208 = vector.load %arg2[%c32, %c0_31] : memref<88x128xf32, #tpu.memory_space<vmem>>, vector<8x128xf32>
    %c40 = arith.constant 40 : index
    %c0_32 = arith.constant 0 : index
    %209 = vector.load %arg2[%c40, %c0_32] : memref<88x128xf32, #tpu.memory_space<vmem>>, vector<8x128xf32>
    %c48 = arith.constant 48 : index
    %c0_33 = arith.constant 0 : index
    %210 = vector.load %arg2[%c48, %c0_33] : memref<88x128xf32, #tpu.memory_space<vmem>>, vector<8x128xf32>
    %cst_34 = arith.constant 0.541323245 : f32
    %211 = vector.broadcast %cst_34 : f32 to vector<8x128xf32>
    %212 = arith.addf %207, %211 : vector<8x128xf32>
    %cst_35 = arith.constant 0.000000e+00 : f32
    %213 = vector.broadcast %cst_35 : f32 to vector<8x128xf32>
    %214 = arith.maximumf %212, %213 : vector<8x128xf32>
    %215 = math.absf %212 : vector<8x128xf32>
    %cst_36 = arith.constant 0.000000e+00 : f32
    %216 = vector.broadcast %cst_36 : f32 to vector<8x128xf32>
    %217 = arith.subf %216, %215 : vector<8x128xf32>
    %218 = math.exp %217 : vector<8x128xf32>
    %cst_37 = arith.constant 1.000000e+00 : f32
    %219 = vector.broadcast %cst_37 : f32 to vector<8x128xf32>
    %220 = arith.addf %219, %218 : vector<8x128xf32>
    %221 = math.log %220 : vector<8x128xf32>
    %222 = arith.addf %214, %221 : vector<8x128xf32>
    %cst_38 = arith.constant dense<0xFF800000> : vector<128xf32>
    %223 = vector.multi_reduction <maximumf>, %210, %cst_38 [0] : vector<8x128xf32> to vector<128xf32>
    %224 = vector.shape_cast %223 : vector<128xf32> to vector<1x128xf32>
    %225 = vector.broadcast %224 : vector<1x128xf32> to vector<8x128xf32>
    %226 = arith.subf %210, %225 : vector<8x128xf32>
    %227 = math.exp %226 : vector<8x128xf32>
    %228 = vector.extract_strided_slice %1 {offsets = [0, 0], sizes = [8, 1], strides = [1, 1]} : vector<8x8xf32> to vector<8x1xf32>
    %229 = vector.extract_strided_slice %227 {offsets = [0, 0], sizes = [1, 128], strides = [1, 1]} : vector<8x128xf32> to vector<1x128xf32>
    %230 = vector.broadcast %228 : vector<8x1xf32> to vector<8x128xf32>
    %231 = vector.broadcast %229 : vector<1x128xf32> to vector<8x128xf32>
    %232 = arith.mulf %230, %231 : vector<8x128xf32>
    %233 = vector.extract_strided_slice %1 {offsets = [0, 1], sizes = [8, 1], strides = [1, 1]} : vector<8x8xf32> to vector<8x1xf32>
    %234 = vector.extract_strided_slice %227 {offsets = [1, 0], sizes = [1, 128], strides = [1, 1]} : vector<8x128xf32> to vector<1x128xf32>
    %235 = vector.broadcast %233 : vector<8x1xf32> to vector<8x128xf32>
    %236 = vector.broadcast %234 : vector<1x128xf32> to vector<8x128xf32>
    %237 = arith.mulf %235, %236 : vector<8x128xf32>
    %238 = arith.addf %232, %237 : vector<8x128xf32>
    %239 = vector.extract_strided_slice %1 {offsets = [0, 2], sizes = [8, 1], strides = [1, 1]} : vector<8x8xf32> to vector<8x1xf32>
    %240 = vector.extract_strided_slice %227 {offsets = [2, 0], sizes = [1, 128], strides = [1, 1]} : vector<8x128xf32> to vector<1x128xf32>
    %241 = vector.broadcast %239 : vector<8x1xf32> to vector<8x128xf32>
    %242 = vector.broadcast %240 : vector<1x128xf32> to vector<8x128xf32>
    %243 = arith.mulf %241, %242 : vector<8x128xf32>
    %244 = arith.addf %238, %243 : vector<8x128xf32>
    %245 = vector.extract_strided_slice %1 {offsets = [0, 3], sizes = [8, 1], strides = [1, 1]} : vector<8x8xf32> to vector<8x1xf32>
    %246 = vector.extract_strided_slice %227 {offsets = [3, 0], sizes = [1, 128], strides = [1, 1]} : vector<8x128xf32> to vector<1x128xf32>
    %247 = vector.broadcast %245 : vector<8x1xf32> to vector<8x128xf32>
    %248 = vector.broadcast %246 : vector<1x128xf32> to vector<8x128xf32>
    %249 = arith.mulf %247, %248 : vector<8x128xf32>
    %250 = arith.addf %244, %249 : vector<8x128xf32>
    %251 = vector.extract_strided_slice %1 {offsets = [0, 4], sizes = [8, 1], strides = [1, 1]} : vector<8x8xf32> to vector<8x1xf32>
    %252 = vector.extract_strided_slice %227 {offsets = [4, 0], sizes = [1, 128], strides = [1, 1]} : vector<8x128xf32> to vector<1x128xf32>
    %253 = vector.broadcast %251 : vector<8x1xf32> to vector<8x128xf32>
    %254 = vector.broadcast %252 : vector<1x128xf32> to vector<8x128xf32>
    %255 = arith.mulf %253, %254 : vector<8x128xf32>
    %256 = arith.addf %250, %255 : vector<8x128xf32>
    %257 = vector.extract_strided_slice %1 {offsets = [0, 5], sizes = [8, 1], strides = [1, 1]} : vector<8x8xf32> to vector<8x1xf32>
    %258 = vector.extract_strided_slice %227 {offsets = [5, 0], sizes = [1, 128], strides = [1, 1]} : vector<8x128xf32> to vector<1x128xf32>
    %259 = vector.broadcast %257 : vector<8x1xf32> to vector<8x128xf32>
    %260 = vector.broadcast %258 : vector<1x128xf32> to vector<8x128xf32>
    %261 = arith.mulf %259, %260 : vector<8x128xf32>
    %262 = arith.addf %256, %261 : vector<8x128xf32>
    %263 = vector.extract_strided_slice %1 {offsets = [0, 6], sizes = [8, 1], strides = [1, 1]} : vector<8x8xf32> to vector<8x1xf32>
    %264 = vector.extract_strided_slice %227 {offsets = [6, 0], sizes = [1, 128], strides = [1, 1]} : vector<8x128xf32> to vector<1x128xf32>
    %265 = vector.broadcast %263 : vector<8x1xf32> to vector<8x128xf32>
    %266 = vector.broadcast %264 : vector<1x128xf32> to vector<8x128xf32>
    %267 = arith.mulf %265, %266 : vector<8x128xf32>
    %268 = arith.addf %262, %267 : vector<8x128xf32>
    %269 = vector.extract_strided_slice %1 {offsets = [0, 7], sizes = [8, 1], strides = [1, 1]} : vector<8x8xf32> to vector<8x1xf32>
    %270 = vector.extract_strided_slice %227 {offsets = [7, 0], sizes = [1, 128], strides = [1, 1]} : vector<8x128xf32> to vector<1x128xf32>
    %271 = vector.broadcast %269 : vector<8x1xf32> to vector<8x128xf32>
    %272 = vector.broadcast %270 : vector<1x128xf32> to vector<8x128xf32>
    %273 = arith.mulf %271, %272 : vector<8x128xf32>
    %274 = arith.addf %268, %273 : vector<8x128xf32>
    %275 = arith.mulf %227, %146 : vector<8x128xf32>
    %276 = vector.extract_strided_slice %1 {offsets = [0, 0], sizes = [8, 1], strides = [1, 1]} : vector<8x8xf32> to vector<8x1xf32>
    %277 = vector.extract_strided_slice %275 {offsets = [0, 0], sizes = [1, 128], strides = [1, 1]} : vector<8x128xf32> to vector<1x128xf32>
    %278 = vector.broadcast %276 : vector<8x1xf32> to vector<8x128xf32>
    %279 = vector.broadcast %277 : vector<1x128xf32> to vector<8x128xf32>
    %280 = arith.mulf %278, %279 : vector<8x128xf32>
    %281 = vector.extract_strided_slice %1 {offsets = [0, 1], sizes = [8, 1], strides = [1, 1]} : vector<8x8xf32> to vector<8x1xf32>
    %282 = vector.extract_strided_slice %275 {offsets = [1, 0], sizes = [1, 128], strides = [1, 1]} : vector<8x128xf32> to vector<1x128xf32>
    %283 = vector.broadcast %281 : vector<8x1xf32> to vector<8x128xf32>
    %284 = vector.broadcast %282 : vector<1x128xf32> to vector<8x128xf32>
    %285 = arith.mulf %283, %284 : vector<8x128xf32>
    %286 = arith.addf %280, %285 : vector<8x128xf32>
    %287 = vector.extract_strided_slice %1 {offsets = [0, 2], sizes = [8, 1], strides = [1, 1]} : vector<8x8xf32> to vector<8x1xf32>
    %288 = vector.extract_strided_slice %275 {offsets = [2, 0], sizes = [1, 128], strides = [1, 1]} : vector<8x128xf32> to vector<1x128xf32>
    %289 = vector.broadcast %287 : vector<8x1xf32> to vector<8x128xf32>
    %290 = vector.broadcast %288 : vector<1x128xf32> to vector<8x128xf32>
    %291 = arith.mulf %289, %290 : vector<8x128xf32>
    %292 = arith.addf %286, %291 : vector<8x128xf32>
    %293 = vector.extract_strided_slice %1 {offsets = [0, 3], sizes = [8, 1], strides = [1, 1]} : vector<8x8xf32> to vector<8x1xf32>
    %294 = vector.extract_strided_slice %275 {offsets = [3, 0], sizes = [1, 128], strides = [1, 1]} : vector<8x128xf32> to vector<1x128xf32>
    %295 = vector.broadcast %293 : vector<8x1xf32> to vector<8x128xf32>
    %296 = vector.broadcast %294 : vector<1x128xf32> to vector<8x128xf32>
    %297 = arith.mulf %295, %296 : vector<8x128xf32>
    %298 = arith.addf %292, %297 : vector<8x128xf32>
    %299 = vector.extract_strided_slice %1 {offsets = [0, 4], sizes = [8, 1], strides = [1, 1]} : vector<8x8xf32> to vector<8x1xf32>
    %300 = vector.extract_strided_slice %275 {offsets = [4, 0], sizes = [1, 128], strides = [1, 1]} : vector<8x128xf32> to vector<1x128xf32>
    %301 = vector.broadcast %299 : vector<8x1xf32> to vector<8x128xf32>
    %302 = vector.broadcast %300 : vector<1x128xf32> to vector<8x128xf32>
    %303 = arith.mulf %301, %302 : vector<8x128xf32>
    %304 = arith.addf %298, %303 : vector<8x128xf32>
    %305 = vector.extract_strided_slice %1 {offsets = [0, 5], sizes = [8, 1], strides = [1, 1]} : vector<8x8xf32> to vector<8x1xf32>
    %306 = vector.extract_strided_slice %275 {offsets = [5, 0], sizes = [1, 128], strides = [1, 1]} : vector<8x128xf32> to vector<1x128xf32>
    %307 = vector.broadcast %305 : vector<8x1xf32> to vector<8x128xf32>
    %308 = vector.broadcast %306 : vector<1x128xf32> to vector<8x128xf32>
    %309 = arith.mulf %307, %308 : vector<8x128xf32>
    %310 = arith.addf %304, %309 : vector<8x128xf32>
    %311 = vector.extract_strided_slice %1 {offsets = [0, 6], sizes = [8, 1], strides = [1, 1]} : vector<8x8xf32> to vector<8x1xf32>
    %312 = vector.extract_strided_slice %275 {offsets = [6, 0], sizes = [1, 128], strides = [1, 1]} : vector<8x128xf32> to vector<1x128xf32>
    %313 = vector.broadcast %311 : vector<8x1xf32> to vector<8x128xf32>
    %314 = vector.broadcast %312 : vector<1x128xf32> to vector<8x128xf32>
    %315 = arith.mulf %313, %314 : vector<8x128xf32>
    %316 = arith.addf %310, %315 : vector<8x128xf32>
    %317 = vector.extract_strided_slice %1 {offsets = [0, 7], sizes = [8, 1], strides = [1, 1]} : vector<8x8xf32> to vector<8x1xf32>
    %318 = vector.extract_strided_slice %275 {offsets = [7, 0], sizes = [1, 128], strides = [1, 1]} : vector<8x128xf32> to vector<1x128xf32>
    %319 = vector.broadcast %317 : vector<8x1xf32> to vector<8x128xf32>
    %320 = vector.broadcast %318 : vector<1x128xf32> to vector<8x128xf32>
    %321 = arith.mulf %319, %320 : vector<8x128xf32>
    %322 = arith.addf %316, %321 : vector<8x128xf32>
    %cst_39 = arith.constant 1.000000e+00 : f32
    %323 = vector.broadcast %cst_39 : f32 to vector<8x128xf32>
    %324 = arith.divf %323, %274 : vector<8x128xf32>
    %325 = arith.mulf %322, %324 : vector<8x128xf32>
    %326 = arith.mulf %222, %325 : vector<8x128xf32>
    %327 = arith.addf %326, %208 : vector<8x128xf32>
    %328 = math.absf %327 : vector<8x128xf32>
    %cst_40 = arith.constant 0.000000e+00 : f32
    %329 = vector.broadcast %cst_40 : f32 to vector<8x128xf32>
    %330 = arith.subf %329, %328 : vector<8x128xf32>
    %331 = math.exp %330 : vector<8x128xf32>
    %cst_41 = arith.constant 0.000000e+00 : f32
    %332 = vector.broadcast %cst_41 : f32 to vector<8x128xf32>
    %333 = arith.cmpf oge, %327, %332 : vector<8x128xf32>
    %cst_42 = arith.constant 1.000000e+00 : f32
    %334 = vector.broadcast %cst_42 : f32 to vector<8x128xf32>
    %335 = arith.select %333, %334, %331 : vector<8x128xi1>, vector<8x128xf32>
    %cst_43 = arith.constant 1.000000e+00 : f32
    %336 = vector.broadcast %cst_43 : f32 to vector<8x128xf32>
    %337 = arith.addf %336, %331 : vector<8x128xf32>
    %338 = arith.divf %335, %337 : vector<8x128xf32>
    %cst_44 = arith.constant dense<0xFF800000> : vector<128xf32>
    %339 = vector.multi_reduction <maximumf>, %209, %cst_44 [0] : vector<8x128xf32> to vector<128xf32>
    %340 = vector.shape_cast %339 : vector<128xf32> to vector<1x128xf32>
    %341 = vector.broadcast %340 : vector<1x128xf32> to vector<8x128xf32>
    %342 = arith.subf %209, %341 : vector<8x128xf32>
    %343 = math.exp %342 : vector<8x128xf32>
    %344 = vector.extract_strided_slice %2 {offsets = [0, 0], sizes = [8, 1], strides = [1, 1]} : vector<8x8xf32> to vector<8x1xf32>
    %345 = vector.extract_strided_slice %343 {offsets = [0, 0], sizes = [1, 128], strides = [1, 1]} : vector<8x128xf32> to vector<1x128xf32>
    %346 = vector.broadcast %344 : vector<8x1xf32> to vector<8x128xf32>
    %347 = vector.broadcast %345 : vector<1x128xf32> to vector<8x128xf32>
    %348 = arith.mulf %346, %347 : vector<8x128xf32>
    %349 = vector.extract_strided_slice %2 {offsets = [0, 1], sizes = [8, 1], strides = [1, 1]} : vector<8x8xf32> to vector<8x1xf32>
    %350 = vector.extract_strided_slice %343 {offsets = [1, 0], sizes = [1, 128], strides = [1, 1]} : vector<8x128xf32> to vector<1x128xf32>
    %351 = vector.broadcast %349 : vector<8x1xf32> to vector<8x128xf32>
    %352 = vector.broadcast %350 : vector<1x128xf32> to vector<8x128xf32>
    %353 = arith.mulf %351, %352 : vector<8x128xf32>
    %354 = arith.addf %348, %353 : vector<8x128xf32>
    %355 = vector.extract_strided_slice %2 {offsets = [0, 2], sizes = [8, 1], strides = [1, 1]} : vector<8x8xf32> to vector<8x1xf32>
    %356 = vector.extract_strided_slice %343 {offsets = [2, 0], sizes = [1, 128], strides = [1, 1]} : vector<8x128xf32> to vector<1x128xf32>
    %357 = vector.broadcast %355 : vector<8x1xf32> to vector<8x128xf32>
    %358 = vector.broadcast %356 : vector<1x128xf32> to vector<8x128xf32>
    %359 = arith.mulf %357, %358 : vector<8x128xf32>
    %360 = arith.addf %354, %359 : vector<8x128xf32>
    %361 = vector.extract_strided_slice %2 {offsets = [0, 3], sizes = [8, 1], strides = [1, 1]} : vector<8x8xf32> to vector<8x1xf32>
    %362 = vector.extract_strided_slice %343 {offsets = [3, 0], sizes = [1, 128], strides = [1, 1]} : vector<8x128xf32> to vector<1x128xf32>
    %363 = vector.broadcast %361 : vector<8x1xf32> to vector<8x128xf32>
    %364 = vector.broadcast %362 : vector<1x128xf32> to vector<8x128xf32>
    %365 = arith.mulf %363, %364 : vector<8x128xf32>
    %366 = arith.addf %360, %365 : vector<8x128xf32>
    %367 = vector.extract_strided_slice %2 {offsets = [0, 4], sizes = [8, 1], strides = [1, 1]} : vector<8x8xf32> to vector<8x1xf32>
    %368 = vector.extract_strided_slice %343 {offsets = [4, 0], sizes = [1, 128], strides = [1, 1]} : vector<8x128xf32> to vector<1x128xf32>
    %369 = vector.broadcast %367 : vector<8x1xf32> to vector<8x128xf32>
    %370 = vector.broadcast %368 : vector<1x128xf32> to vector<8x128xf32>
    %371 = arith.mulf %369, %370 : vector<8x128xf32>
    %372 = arith.addf %366, %371 : vector<8x128xf32>
    %373 = vector.extract_strided_slice %2 {offsets = [0, 5], sizes = [8, 1], strides = [1, 1]} : vector<8x8xf32> to vector<8x1xf32>
    %374 = vector.extract_strided_slice %343 {offsets = [5, 0], sizes = [1, 128], strides = [1, 1]} : vector<8x128xf32> to vector<1x128xf32>
    %375 = vector.broadcast %373 : vector<8x1xf32> to vector<8x128xf32>
    %376 = vector.broadcast %374 : vector<1x128xf32> to vector<8x128xf32>
    %377 = arith.mulf %375, %376 : vector<8x128xf32>
    %378 = arith.addf %372, %377 : vector<8x128xf32>
    %379 = vector.extract_strided_slice %2 {offsets = [0, 6], sizes = [8, 1], strides = [1, 1]} : vector<8x8xf32> to vector<8x1xf32>
    %380 = vector.extract_strided_slice %343 {offsets = [6, 0], sizes = [1, 128], strides = [1, 1]} : vector<8x128xf32> to vector<1x128xf32>
    %381 = vector.broadcast %379 : vector<8x1xf32> to vector<8x128xf32>
    %382 = vector.broadcast %380 : vector<1x128xf32> to vector<8x128xf32>
    %383 = arith.mulf %381, %382 : vector<8x128xf32>
    %384 = arith.addf %378, %383 : vector<8x128xf32>
    %385 = vector.extract_strided_slice %2 {offsets = [0, 7], sizes = [8, 1], strides = [1, 1]} : vector<8x8xf32> to vector<8x1xf32>
    %386 = vector.extract_strided_slice %343 {offsets = [7, 0], sizes = [1, 128], strides = [1, 1]} : vector<8x128xf32> to vector<1x128xf32>
    %387 = vector.broadcast %385 : vector<8x1xf32> to vector<8x128xf32>
    %388 = vector.broadcast %386 : vector<1x128xf32> to vector<8x128xf32>
    %389 = arith.mulf %387, %388 : vector<8x128xf32>
    %390 = arith.addf %384, %389 : vector<8x128xf32>
    %391 = arith.mulf %343, %338 : vector<8x128xf32>
    %392 = vector.extract_strided_slice %2 {offsets = [0, 0], sizes = [8, 1], strides = [1, 1]} : vector<8x8xf32> to vector<8x1xf32>
    %393 = vector.extract_strided_slice %391 {offsets = [0, 0], sizes = [1, 128], strides = [1, 1]} : vector<8x128xf32> to vector<1x128xf32>
    %394 = vector.broadcast %392 : vector<8x1xf32> to vector<8x128xf32>
    %395 = vector.broadcast %393 : vector<1x128xf32> to vector<8x128xf32>
    %396 = arith.mulf %394, %395 : vector<8x128xf32>
    %397 = vector.extract_strided_slice %2 {offsets = [0, 1], sizes = [8, 1], strides = [1, 1]} : vector<8x8xf32> to vector<8x1xf32>
    %398 = vector.extract_strided_slice %391 {offsets = [1, 0], sizes = [1, 128], strides = [1, 1]} : vector<8x128xf32> to vector<1x128xf32>
    %399 = vector.broadcast %397 : vector<8x1xf32> to vector<8x128xf32>
    %400 = vector.broadcast %398 : vector<1x128xf32> to vector<8x128xf32>
    %401 = arith.mulf %399, %400 : vector<8x128xf32>
    %402 = arith.addf %396, %401 : vector<8x128xf32>
    %403 = vector.extract_strided_slice %2 {offsets = [0, 2], sizes = [8, 1], strides = [1, 1]} : vector<8x8xf32> to vector<8x1xf32>
    %404 = vector.extract_strided_slice %391 {offsets = [2, 0], sizes = [1, 128], strides = [1, 1]} : vector<8x128xf32> to vector<1x128xf32>
    %405 = vector.broadcast %403 : vector<8x1xf32> to vector<8x128xf32>
    %406 = vector.broadcast %404 : vector<1x128xf32> to vector<8x128xf32>
    %407 = arith.mulf %405, %406 : vector<8x128xf32>
    %408 = arith.addf %402, %407 : vector<8x128xf32>
    %409 = vector.extract_strided_slice %2 {offsets = [0, 3], sizes = [8, 1], strides = [1, 1]} : vector<8x8xf32> to vector<8x1xf32>
    %410 = vector.extract_strided_slice %391 {offsets = [3, 0], sizes = [1, 128], strides = [1, 1]} : vector<8x128xf32> to vector<1x128xf32>
    %411 = vector.broadcast %409 : vector<8x1xf32> to vector<8x128xf32>
    %412 = vector.broadcast %410 : vector<1x128xf32> to vector<8x128xf32>
    %413 = arith.mulf %411, %412 : vector<8x128xf32>
    %414 = arith.addf %408, %413 : vector<8x128xf32>
    %415 = vector.extract_strided_slice %2 {offsets = [0, 4], sizes = [8, 1], strides = [1, 1]} : vector<8x8xf32> to vector<8x1xf32>
    %416 = vector.extract_strided_slice %391 {offsets = [4, 0], sizes = [1, 128], strides = [1, 1]} : vector<8x128xf32> to vector<1x128xf32>
    %417 = vector.broadcast %415 : vector<8x1xf32> to vector<8x128xf32>
    %418 = vector.broadcast %416 : vector<1x128xf32> to vector<8x128xf32>
    %419 = arith.mulf %417, %418 : vector<8x128xf32>
    %420 = arith.addf %414, %419 : vector<8x128xf32>
    %421 = vector.extract_strided_slice %2 {offsets = [0, 5], sizes = [8, 1], strides = [1, 1]} : vector<8x8xf32> to vector<8x1xf32>
    %422 = vector.extract_strided_slice %391 {offsets = [5, 0], sizes = [1, 128], strides = [1, 1]} : vector<8x128xf32> to vector<1x128xf32>
    %423 = vector.broadcast %421 : vector<8x1xf32> to vector<8x128xf32>
    %424 = vector.broadcast %422 : vector<1x128xf32> to vector<8x128xf32>
    %425 = arith.mulf %423, %424 : vector<8x128xf32>
    %426 = arith.addf %420, %425 : vector<8x128xf32>
    %427 = vector.extract_strided_slice %2 {offsets = [0, 6], sizes = [8, 1], strides = [1, 1]} : vector<8x8xf32> to vector<8x1xf32>
    %428 = vector.extract_strided_slice %391 {offsets = [6, 0], sizes = [1, 128], strides = [1, 1]} : vector<8x128xf32> to vector<1x128xf32>
    %429 = vector.broadcast %427 : vector<8x1xf32> to vector<8x128xf32>
    %430 = vector.broadcast %428 : vector<1x128xf32> to vector<8x128xf32>
    %431 = arith.mulf %429, %430 : vector<8x128xf32>
    %432 = arith.addf %426, %431 : vector<8x128xf32>
    %433 = vector.extract_strided_slice %2 {offsets = [0, 7], sizes = [8, 1], strides = [1, 1]} : vector<8x8xf32> to vector<8x1xf32>
    %434 = vector.extract_strided_slice %391 {offsets = [7, 0], sizes = [1, 128], strides = [1, 1]} : vector<8x128xf32> to vector<1x128xf32>
    %435 = vector.broadcast %433 : vector<8x1xf32> to vector<8x128xf32>
    %436 = vector.broadcast %434 : vector<1x128xf32> to vector<8x128xf32>
    %437 = arith.mulf %435, %436 : vector<8x128xf32>
    %438 = arith.addf %432, %437 : vector<8x128xf32>
    %cst_45 = arith.constant 1.000000e+00 : f32
    %439 = vector.broadcast %cst_45 : f32 to vector<8x128xf32>
    %440 = arith.divf %439, %390 : vector<8x128xf32>
    %441 = arith.mulf %438, %440 : vector<8x128xf32>
    %cst_46 = arith.constant 0.999998986 : f32
    %442 = vector.broadcast %cst_46 : f32 to vector<8x128xf32>
    %443 = arith.mulf %441, %442 : vector<8x128xf32>
    %cst_47 = arith.constant 5.000000e-07 : f32
    %444 = vector.broadcast %cst_47 : f32 to vector<8x128xf32>
    %445 = arith.addf %443, %444 : vector<8x128xf32>
    %446 = math.log %445 : vector<8x128xf32>
    %cst_48 = arith.constant 1.000000e+00 : f32
    %447 = vector.broadcast %cst_48 : f32 to vector<8x128xf32>
    %448 = arith.subf %447, %445 : vector<8x128xf32>
    %449 = math.log %448 : vector<8x128xf32>
    %450 = arith.subf %446, %449 : vector<8x128xf32>
    %cst_49 = arith.constant 0.999997973 : f32
    %451 = vector.broadcast %cst_49 : f32 to vector<8x128xf32>
    %452 = arith.mulf %222, %451 : vector<8x128xf32>
    %453 = arith.mulf %343, %452 : vector<8x128xf32>
    %cst_50 = arith.constant 1.000000e+00 : f32
    %454 = vector.broadcast %cst_50 : f32 to vector<8x128xf32>
    %455 = arith.subf %454, %338 : vector<8x128xf32>
    %456 = arith.mulf %338, %455 : vector<8x128xf32>
    %457 = arith.mulf %453, %456 : vector<8x128xf32>
    %458 = arith.addf %210, %206 : vector<8x128xf32>
    %cst_51 = arith.constant dense<0xFF800000> : vector<128xf32>
    %459 = vector.multi_reduction <maximumf>, %458, %cst_51 [0] : vector<8x128xf32> to vector<128xf32>
    %460 = vector.shape_cast %459 : vector<128xf32> to vector<1x128xf32>
    %461 = vector.broadcast %460 : vector<1x128xf32> to vector<8x128xf32>
    %462 = arith.subf %458, %461 : vector<8x128xf32>
    %463 = math.exp %462 : vector<8x128xf32>
    %464 = vector.extract_strided_slice %1 {offsets = [0, 0], sizes = [8, 1], strides = [1, 1]} : vector<8x8xf32> to vector<8x1xf32>
    %465 = vector.extract_strided_slice %463 {offsets = [0, 0], sizes = [1, 128], strides = [1, 1]} : vector<8x128xf32> to vector<1x128xf32>
    %466 = vector.broadcast %464 : vector<8x1xf32> to vector<8x128xf32>
    %467 = vector.broadcast %465 : vector<1x128xf32> to vector<8x128xf32>
    %468 = arith.mulf %466, %467 : vector<8x128xf32>
    %469 = vector.extract_strided_slice %1 {offsets = [0, 1], sizes = [8, 1], strides = [1, 1]} : vector<8x8xf32> to vector<8x1xf32>
    %470 = vector.extract_strided_slice %463 {offsets = [1, 0], sizes = [1, 128], strides = [1, 1]} : vector<8x128xf32> to vector<1x128xf32>
    %471 = vector.broadcast %469 : vector<8x1xf32> to vector<8x128xf32>
    %472 = vector.broadcast %470 : vector<1x128xf32> to vector<8x128xf32>
    %473 = arith.mulf %471, %472 : vector<8x128xf32>
    %474 = arith.addf %468, %473 : vector<8x128xf32>
    %475 = vector.extract_strided_slice %1 {offsets = [0, 2], sizes = [8, 1], strides = [1, 1]} : vector<8x8xf32> to vector<8x1xf32>
    %476 = vector.extract_strided_slice %463 {offsets = [2, 0], sizes = [1, 128], strides = [1, 1]} : vector<8x128xf32> to vector<1x128xf32>
    %477 = vector.broadcast %475 : vector<8x1xf32> to vector<8x128xf32>
    %478 = vector.broadcast %476 : vector<1x128xf32> to vector<8x128xf32>
    %479 = arith.mulf %477, %478 : vector<8x128xf32>
    %480 = arith.addf %474, %479 : vector<8x128xf32>
    %481 = vector.extract_strided_slice %1 {offsets = [0, 3], sizes = [8, 1], strides = [1, 1]} : vector<8x8xf32> to vector<8x1xf32>
    %482 = vector.extract_strided_slice %463 {offsets = [3, 0], sizes = [1, 128], strides = [1, 1]} : vector<8x128xf32> to vector<1x128xf32>
    %483 = vector.broadcast %481 : vector<8x1xf32> to vector<8x128xf32>
    %484 = vector.broadcast %482 : vector<1x128xf32> to vector<8x128xf32>
    %485 = arith.mulf %483, %484 : vector<8x128xf32>
    %486 = arith.addf %480, %485 : vector<8x128xf32>
    %487 = vector.extract_strided_slice %1 {offsets = [0, 4], sizes = [8, 1], strides = [1, 1]} : vector<8x8xf32> to vector<8x1xf32>
    %488 = vector.extract_strided_slice %463 {offsets = [4, 0], sizes = [1, 128], strides = [1, 1]} : vector<8x128xf32> to vector<1x128xf32>
    %489 = vector.broadcast %487 : vector<8x1xf32> to vector<8x128xf32>
    %490 = vector.broadcast %488 : vector<1x128xf32> to vector<8x128xf32>
    %491 = arith.mulf %489, %490 : vector<8x128xf32>
    %492 = arith.addf %486, %491 : vector<8x128xf32>
    %493 = vector.extract_strided_slice %1 {offsets = [0, 5], sizes = [8, 1], strides = [1, 1]} : vector<8x8xf32> to vector<8x1xf32>
    %494 = vector.extract_strided_slice %463 {offsets = [5, 0], sizes = [1, 128], strides = [1, 1]} : vector<8x128xf32> to vector<1x128xf32>
    %495 = vector.broadcast %493 : vector<8x1xf32> to vector<8x128xf32>
    %496 = vector.broadcast %494 : vector<1x128xf32> to vector<8x128xf32>
    %497 = arith.mulf %495, %496 : vector<8x128xf32>
    %498 = arith.addf %492, %497 : vector<8x128xf32>
    %499 = vector.extract_strided_slice %1 {offsets = [0, 6], sizes = [8, 1], strides = [1, 1]} : vector<8x8xf32> to vector<8x1xf32>
    %500 = vector.extract_strided_slice %463 {offsets = [6, 0], sizes = [1, 128], strides = [1, 1]} : vector<8x128xf32> to vector<1x128xf32>
    %501 = vector.broadcast %499 : vector<8x1xf32> to vector<8x128xf32>
    %502 = vector.broadcast %500 : vector<1x128xf32> to vector<8x128xf32>
    %503 = arith.mulf %501, %502 : vector<8x128xf32>
    %504 = arith.addf %498, %503 : vector<8x128xf32>
    %505 = vector.extract_strided_slice %1 {offsets = [0, 7], sizes = [8, 1], strides = [1, 1]} : vector<8x8xf32> to vector<8x1xf32>
    %506 = vector.extract_strided_slice %463 {offsets = [7, 0], sizes = [1, 128], strides = [1, 1]} : vector<8x128xf32> to vector<1x128xf32>
    %507 = vector.broadcast %505 : vector<8x1xf32> to vector<8x128xf32>
    %508 = vector.broadcast %506 : vector<1x128xf32> to vector<8x128xf32>
    %509 = arith.mulf %507, %508 : vector<8x128xf32>
    %510 = arith.addf %504, %509 : vector<8x128xf32>
    %511 = arith.mulf %457, %324 : vector<8x128xf32>
    %512 = arith.mulf %511, %510 : vector<8x128xf32>
    %513 = vector.extract_strided_slice %2 {offsets = [0, 0], sizes = [8, 1], strides = [1, 1]} : vector<8x8xf32> to vector<8x1xf32>
    %514 = vector.extract_strided_slice %512 {offsets = [0, 0], sizes = [1, 128], strides = [1, 1]} : vector<8x128xf32> to vector<1x128xf32>
    %515 = vector.broadcast %513 : vector<8x1xf32> to vector<8x128xf32>
    %516 = vector.broadcast %514 : vector<1x128xf32> to vector<8x128xf32>
    %517 = arith.mulf %515, %516 : vector<8x128xf32>
    %518 = vector.extract_strided_slice %2 {offsets = [0, 1], sizes = [8, 1], strides = [1, 1]} : vector<8x8xf32> to vector<8x1xf32>
    %519 = vector.extract_strided_slice %512 {offsets = [1, 0], sizes = [1, 128], strides = [1, 1]} : vector<8x128xf32> to vector<1x128xf32>
    %520 = vector.broadcast %518 : vector<8x1xf32> to vector<8x128xf32>
    %521 = vector.broadcast %519 : vector<1x128xf32> to vector<8x128xf32>
    %522 = arith.mulf %520, %521 : vector<8x128xf32>
    %523 = arith.addf %517, %522 : vector<8x128xf32>
    %524 = vector.extract_strided_slice %2 {offsets = [0, 2], sizes = [8, 1], strides = [1, 1]} : vector<8x8xf32> to vector<8x1xf32>
    %525 = vector.extract_strided_slice %512 {offsets = [2, 0], sizes = [1, 128], strides = [1, 1]} : vector<8x128xf32> to vector<1x128xf32>
    %526 = vector.broadcast %524 : vector<8x1xf32> to vector<8x128xf32>
    %527 = vector.broadcast %525 : vector<1x128xf32> to vector<8x128xf32>
    %528 = arith.mulf %526, %527 : vector<8x128xf32>
    %529 = arith.addf %523, %528 : vector<8x128xf32>
    %530 = vector.extract_strided_slice %2 {offsets = [0, 3], sizes = [8, 1], strides = [1, 1]} : vector<8x8xf32> to vector<8x1xf32>
    %531 = vector.extract_strided_slice %512 {offsets = [3, 0], sizes = [1, 128], strides = [1, 1]} : vector<8x128xf32> to vector<1x128xf32>
    %532 = vector.broadcast %530 : vector<8x1xf32> to vector<8x128xf32>
    %533 = vector.broadcast %531 : vector<1x128xf32> to vector<8x128xf32>
    %534 = arith.mulf %532, %533 : vector<8x128xf32>
    %535 = arith.addf %529, %534 : vector<8x128xf32>
    %536 = vector.extract_strided_slice %2 {offsets = [0, 4], sizes = [8, 1], strides = [1, 1]} : vector<8x8xf32> to vector<8x1xf32>
    %537 = vector.extract_strided_slice %512 {offsets = [4, 0], sizes = [1, 128], strides = [1, 1]} : vector<8x128xf32> to vector<1x128xf32>
    %538 = vector.broadcast %536 : vector<8x1xf32> to vector<8x128xf32>
    %539 = vector.broadcast %537 : vector<1x128xf32> to vector<8x128xf32>
    %540 = arith.mulf %538, %539 : vector<8x128xf32>
    %541 = arith.addf %535, %540 : vector<8x128xf32>
    %542 = vector.extract_strided_slice %2 {offsets = [0, 5], sizes = [8, 1], strides = [1, 1]} : vector<8x8xf32> to vector<8x1xf32>
    %543 = vector.extract_strided_slice %512 {offsets = [5, 0], sizes = [1, 128], strides = [1, 1]} : vector<8x128xf32> to vector<1x128xf32>
    %544 = vector.broadcast %542 : vector<8x1xf32> to vector<8x128xf32>
    %545 = vector.broadcast %543 : vector<1x128xf32> to vector<8x128xf32>
    %546 = arith.mulf %544, %545 : vector<8x128xf32>
    %547 = arith.addf %541, %546 : vector<8x128xf32>
    %548 = vector.extract_strided_slice %2 {offsets = [0, 6], sizes = [8, 1], strides = [1, 1]} : vector<8x8xf32> to vector<8x1xf32>
    %549 = vector.extract_strided_slice %512 {offsets = [6, 0], sizes = [1, 128], strides = [1, 1]} : vector<8x128xf32> to vector<1x128xf32>
    %550 = vector.broadcast %548 : vector<8x1xf32> to vector<8x128xf32>
    %551 = vector.broadcast %549 : vector<1x128xf32> to vector<8x128xf32>
    %552 = arith.mulf %550, %551 : vector<8x128xf32>
    %553 = arith.addf %547, %552 : vector<8x128xf32>
    %554 = vector.extract_strided_slice %2 {offsets = [0, 7], sizes = [8, 1], strides = [1, 1]} : vector<8x8xf32> to vector<8x1xf32>
    %555 = vector.extract_strided_slice %512 {offsets = [7, 0], sizes = [1, 128], strides = [1, 1]} : vector<8x128xf32> to vector<1x128xf32>
    %556 = vector.broadcast %554 : vector<8x1xf32> to vector<8x128xf32>
    %557 = vector.broadcast %555 : vector<1x128xf32> to vector<8x128xf32>
    %558 = arith.mulf %556, %557 : vector<8x128xf32>
    %559 = arith.addf %553, %558 : vector<8x128xf32>
    %560 = arith.mulf %559, %440 : vector<8x128xf32>
    %561 = math.log %560 : vector<8x128xf32>
    %562 = arith.subf %460, %224 : vector<1x128xf32>
    %563 = vector.broadcast %562 : vector<1x128xf32> to vector<8x128xf32>
    %564 = arith.addf %561, %563 : vector<8x128xf32>
    %cst_52 = arith.constant -1.00000045E-6 : f32
    %565 = vector.broadcast %cst_52 : f32 to vector<8x128xf32>
    %566 = arith.addf %564, %565 : vector<8x128xf32>
    %567 = arith.addf %446, %449 : vector<8x128xf32>
    %568 = arith.subf %566, %567 : vector<8x128xf32>
    %c56 = arith.constant 56 : index
    %c0_53 = arith.constant 0 : index
    %569 = vector.load %arg2[%c56, %c0_53] : memref<88x128xf32, #tpu.memory_space<vmem>>, vector<8x128xf32>
    %c64 = arith.constant 64 : index
    %c0_54 = arith.constant 0 : index
    %570 = vector.load %arg2[%c64, %c0_54] : memref<88x128xf32, #tpu.memory_space<vmem>>, vector<8x128xf32>
    %c72 = arith.constant 72 : index
    %c0_55 = arith.constant 0 : index
    %571 = vector.load %arg2[%c72, %c0_55] : memref<88x128xf32, #tpu.memory_space<vmem>>, vector<8x128xf32>
    %c80 = arith.constant 80 : index
    %c0_56 = arith.constant 0 : index
    %572 = vector.load %arg2[%c80, %c0_56] : memref<88x128xf32, #tpu.memory_space<vmem>>, vector<8x128xf32>
    %cst_57 = arith.constant 0.541323245 : f32
    %573 = vector.broadcast %cst_57 : f32 to vector<8x128xf32>
    %574 = arith.addf %569, %573 : vector<8x128xf32>
    %cst_58 = arith.constant 0.000000e+00 : f32
    %575 = vector.broadcast %cst_58 : f32 to vector<8x128xf32>
    %576 = arith.maximumf %574, %575 : vector<8x128xf32>
    %577 = math.absf %574 : vector<8x128xf32>
    %cst_59 = arith.constant 0.000000e+00 : f32
    %578 = vector.broadcast %cst_59 : f32 to vector<8x128xf32>
    %579 = arith.subf %578, %577 : vector<8x128xf32>
    %580 = math.exp %579 : vector<8x128xf32>
    %cst_60 = arith.constant 1.000000e+00 : f32
    %581 = vector.broadcast %cst_60 : f32 to vector<8x128xf32>
    %582 = arith.addf %581, %580 : vector<8x128xf32>
    %583 = math.log %582 : vector<8x128xf32>
    %584 = arith.addf %576, %583 : vector<8x128xf32>
    %cst_61 = arith.constant dense<0xFF800000> : vector<128xf32>
    %585 = vector.multi_reduction <maximumf>, %572, %cst_61 [0] : vector<8x128xf32> to vector<128xf32>
    %586 = vector.shape_cast %585 : vector<128xf32> to vector<1x128xf32>
    %587 = vector.broadcast %586 : vector<1x128xf32> to vector<8x128xf32>
    %588 = arith.subf %572, %587 : vector<8x128xf32>
    %589 = math.exp %588 : vector<8x128xf32>
    %590 = vector.extract_strided_slice %3 {offsets = [0, 0], sizes = [8, 1], strides = [1, 1]} : vector<8x8xf32> to vector<8x1xf32>
    %591 = vector.extract_strided_slice %589 {offsets = [0, 0], sizes = [1, 128], strides = [1, 1]} : vector<8x128xf32> to vector<1x128xf32>
    %592 = vector.broadcast %590 : vector<8x1xf32> to vector<8x128xf32>
    %593 = vector.broadcast %591 : vector<1x128xf32> to vector<8x128xf32>
    %594 = arith.mulf %592, %593 : vector<8x128xf32>
    %595 = vector.extract_strided_slice %3 {offsets = [0, 1], sizes = [8, 1], strides = [1, 1]} : vector<8x8xf32> to vector<8x1xf32>
    %596 = vector.extract_strided_slice %589 {offsets = [1, 0], sizes = [1, 128], strides = [1, 1]} : vector<8x128xf32> to vector<1x128xf32>
    %597 = vector.broadcast %595 : vector<8x1xf32> to vector<8x128xf32>
    %598 = vector.broadcast %596 : vector<1x128xf32> to vector<8x128xf32>
    %599 = arith.mulf %597, %598 : vector<8x128xf32>
    %600 = arith.addf %594, %599 : vector<8x128xf32>
    %601 = vector.extract_strided_slice %3 {offsets = [0, 2], sizes = [8, 1], strides = [1, 1]} : vector<8x8xf32> to vector<8x1xf32>
    %602 = vector.extract_strided_slice %589 {offsets = [2, 0], sizes = [1, 128], strides = [1, 1]} : vector<8x128xf32> to vector<1x128xf32>
    %603 = vector.broadcast %601 : vector<8x1xf32> to vector<8x128xf32>
    %604 = vector.broadcast %602 : vector<1x128xf32> to vector<8x128xf32>
    %605 = arith.mulf %603, %604 : vector<8x128xf32>
    %606 = arith.addf %600, %605 : vector<8x128xf32>
    %607 = vector.extract_strided_slice %3 {offsets = [0, 3], sizes = [8, 1], strides = [1, 1]} : vector<8x8xf32> to vector<8x1xf32>
    %608 = vector.extract_strided_slice %589 {offsets = [3, 0], sizes = [1, 128], strides = [1, 1]} : vector<8x128xf32> to vector<1x128xf32>
    %609 = vector.broadcast %607 : vector<8x1xf32> to vector<8x128xf32>
    %610 = vector.broadcast %608 : vector<1x128xf32> to vector<8x128xf32>
    %611 = arith.mulf %609, %610 : vector<8x128xf32>
    %612 = arith.addf %606, %611 : vector<8x128xf32>
    %613 = vector.extract_strided_slice %3 {offsets = [0, 4], sizes = [8, 1], strides = [1, 1]} : vector<8x8xf32> to vector<8x1xf32>
    %614 = vector.extract_strided_slice %589 {offsets = [4, 0], sizes = [1, 128], strides = [1, 1]} : vector<8x128xf32> to vector<1x128xf32>
    %615 = vector.broadcast %613 : vector<8x1xf32> to vector<8x128xf32>
    %616 = vector.broadcast %614 : vector<1x128xf32> to vector<8x128xf32>
    %617 = arith.mulf %615, %616 : vector<8x128xf32>
    %618 = arith.addf %612, %617 : vector<8x128xf32>
    %619 = vector.extract_strided_slice %3 {offsets = [0, 5], sizes = [8, 1], strides = [1, 1]} : vector<8x8xf32> to vector<8x1xf32>
    %620 = vector.extract_strided_slice %589 {offsets = [5, 0], sizes = [1, 128], strides = [1, 1]} : vector<8x128xf32> to vector<1x128xf32>
    %621 = vector.broadcast %619 : vector<8x1xf32> to vector<8x128xf32>
    %622 = vector.broadcast %620 : vector<1x128xf32> to vector<8x128xf32>
    %623 = arith.mulf %621, %622 : vector<8x128xf32>
    %624 = arith.addf %618, %623 : vector<8x128xf32>
    %625 = vector.extract_strided_slice %3 {offsets = [0, 6], sizes = [8, 1], strides = [1, 1]} : vector<8x8xf32> to vector<8x1xf32>
    %626 = vector.extract_strided_slice %589 {offsets = [6, 0], sizes = [1, 128], strides = [1, 1]} : vector<8x128xf32> to vector<1x128xf32>
    %627 = vector.broadcast %625 : vector<8x1xf32> to vector<8x128xf32>
    %628 = vector.broadcast %626 : vector<1x128xf32> to vector<8x128xf32>
    %629 = arith.mulf %627, %628 : vector<8x128xf32>
    %630 = arith.addf %624, %629 : vector<8x128xf32>
    %631 = vector.extract_strided_slice %3 {offsets = [0, 7], sizes = [8, 1], strides = [1, 1]} : vector<8x8xf32> to vector<8x1xf32>
    %632 = vector.extract_strided_slice %589 {offsets = [7, 0], sizes = [1, 128], strides = [1, 1]} : vector<8x128xf32> to vector<1x128xf32>
    %633 = vector.broadcast %631 : vector<8x1xf32> to vector<8x128xf32>
    %634 = vector.broadcast %632 : vector<1x128xf32> to vector<8x128xf32>
    %635 = arith.mulf %633, %634 : vector<8x128xf32>
    %636 = arith.addf %630, %635 : vector<8x128xf32>
    %637 = arith.mulf %589, %450 : vector<8x128xf32>
    %638 = vector.extract_strided_slice %3 {offsets = [0, 0], sizes = [8, 1], strides = [1, 1]} : vector<8x8xf32> to vector<8x1xf32>
    %639 = vector.extract_strided_slice %637 {offsets = [0, 0], sizes = [1, 128], strides = [1, 1]} : vector<8x128xf32> to vector<1x128xf32>
    %640 = vector.broadcast %638 : vector<8x1xf32> to vector<8x128xf32>
    %641 = vector.broadcast %639 : vector<1x128xf32> to vector<8x128xf32>
    %642 = arith.mulf %640, %641 : vector<8x128xf32>
    %643 = vector.extract_strided_slice %3 {offsets = [0, 1], sizes = [8, 1], strides = [1, 1]} : vector<8x8xf32> to vector<8x1xf32>
    %644 = vector.extract_strided_slice %637 {offsets = [1, 0], sizes = [1, 128], strides = [1, 1]} : vector<8x128xf32> to vector<1x128xf32>
    %645 = vector.broadcast %643 : vector<8x1xf32> to vector<8x128xf32>
    %646 = vector.broadcast %644 : vector<1x128xf32> to vector<8x128xf32>
    %647 = arith.mulf %645, %646 : vector<8x128xf32>
    %648 = arith.addf %642, %647 : vector<8x128xf32>
    %649 = vector.extract_strided_slice %3 {offsets = [0, 2], sizes = [8, 1], strides = [1, 1]} : vector<8x8xf32> to vector<8x1xf32>
    %650 = vector.extract_strided_slice %637 {offsets = [2, 0], sizes = [1, 128], strides = [1, 1]} : vector<8x128xf32> to vector<1x128xf32>
    %651 = vector.broadcast %649 : vector<8x1xf32> to vector<8x128xf32>
    %652 = vector.broadcast %650 : vector<1x128xf32> to vector<8x128xf32>
    %653 = arith.mulf %651, %652 : vector<8x128xf32>
    %654 = arith.addf %648, %653 : vector<8x128xf32>
    %655 = vector.extract_strided_slice %3 {offsets = [0, 3], sizes = [8, 1], strides = [1, 1]} : vector<8x8xf32> to vector<8x1xf32>
    %656 = vector.extract_strided_slice %637 {offsets = [3, 0], sizes = [1, 128], strides = [1, 1]} : vector<8x128xf32> to vector<1x128xf32>
    %657 = vector.broadcast %655 : vector<8x1xf32> to vector<8x128xf32>
    %658 = vector.broadcast %656 : vector<1x128xf32> to vector<8x128xf32>
    %659 = arith.mulf %657, %658 : vector<8x128xf32>
    %660 = arith.addf %654, %659 : vector<8x128xf32>
    %661 = vector.extract_strided_slice %3 {offsets = [0, 4], sizes = [8, 1], strides = [1, 1]} : vector<8x8xf32> to vector<8x1xf32>
    %662 = vector.extract_strided_slice %637 {offsets = [4, 0], sizes = [1, 128], strides = [1, 1]} : vector<8x128xf32> to vector<1x128xf32>
    %663 = vector.broadcast %661 : vector<8x1xf32> to vector<8x128xf32>
    %664 = vector.broadcast %662 : vector<1x128xf32> to vector<8x128xf32>
    %665 = arith.mulf %663, %664 : vector<8x128xf32>
    %666 = arith.addf %660, %665 : vector<8x128xf32>
    %667 = vector.extract_strided_slice %3 {offsets = [0, 5], sizes = [8, 1], strides = [1, 1]} : vector<8x8xf32> to vector<8x1xf32>
    %668 = vector.extract_strided_slice %637 {offsets = [5, 0], sizes = [1, 128], strides = [1, 1]} : vector<8x128xf32> to vector<1x128xf32>
    %669 = vector.broadcast %667 : vector<8x1xf32> to vector<8x128xf32>
    %670 = vector.broadcast %668 : vector<1x128xf32> to vector<8x128xf32>
    %671 = arith.mulf %669, %670 : vector<8x128xf32>
    %672 = arith.addf %666, %671 : vector<8x128xf32>
    %673 = vector.extract_strided_slice %3 {offsets = [0, 6], sizes = [8, 1], strides = [1, 1]} : vector<8x8xf32> to vector<8x1xf32>
    %674 = vector.extract_strided_slice %637 {offsets = [6, 0], sizes = [1, 128], strides = [1, 1]} : vector<8x128xf32> to vector<1x128xf32>
    %675 = vector.broadcast %673 : vector<8x1xf32> to vector<8x128xf32>
    %676 = vector.broadcast %674 : vector<1x128xf32> to vector<8x128xf32>
    %677 = arith.mulf %675, %676 : vector<8x128xf32>
    %678 = arith.addf %672, %677 : vector<8x128xf32>
    %679 = vector.extract_strided_slice %3 {offsets = [0, 7], sizes = [8, 1], strides = [1, 1]} : vector<8x8xf32> to vector<8x1xf32>
    %680 = vector.extract_strided_slice %637 {offsets = [7, 0], sizes = [1, 128], strides = [1, 1]} : vector<8x128xf32> to vector<1x128xf32>
    %681 = vector.broadcast %679 : vector<8x1xf32> to vector<8x128xf32>
    %682 = vector.broadcast %680 : vector<1x128xf32> to vector<8x128xf32>
    %683 = arith.mulf %681, %682 : vector<8x128xf32>
    %684 = arith.addf %678, %683 : vector<8x128xf32>
    %cst_62 = arith.constant 1.000000e+00 : f32
    %685 = vector.broadcast %cst_62 : f32 to vector<8x128xf32>
    %686 = arith.divf %685, %636 : vector<8x128xf32>
    %687 = arith.mulf %684, %686 : vector<8x128xf32>
    %688 = arith.mulf %584, %687 : vector<8x128xf32>
    %689 = arith.addf %688, %570 : vector<8x128xf32>
    %690 = math.absf %689 : vector<8x128xf32>
    %cst_63 = arith.constant 0.000000e+00 : f32
    %691 = vector.broadcast %cst_63 : f32 to vector<8x128xf32>
    %692 = arith.subf %691, %690 : vector<8x128xf32>
    %693 = math.exp %692 : vector<8x128xf32>
    %cst_64 = arith.constant 0.000000e+00 : f32
    %694 = vector.broadcast %cst_64 : f32 to vector<8x128xf32>
    %695 = arith.cmpf oge, %689, %694 : vector<8x128xf32>
    %cst_65 = arith.constant 1.000000e+00 : f32
    %696 = vector.broadcast %cst_65 : f32 to vector<8x128xf32>
    %697 = arith.select %695, %696, %693 : vector<8x128xi1>, vector<8x128xf32>
    %cst_66 = arith.constant 1.000000e+00 : f32
    %698 = vector.broadcast %cst_66 : f32 to vector<8x128xf32>
    %699 = arith.addf %698, %693 : vector<8x128xf32>
    %700 = arith.divf %697, %699 : vector<8x128xf32>
    %cst_67 = arith.constant dense<0xFF800000> : vector<128xf32>
    %701 = vector.multi_reduction <maximumf>, %571, %cst_67 [0] : vector<8x128xf32> to vector<128xf32>
    %702 = vector.shape_cast %701 : vector<128xf32> to vector<1x128xf32>
    %703 = vector.broadcast %702 : vector<1x128xf32> to vector<8x128xf32>
    %704 = arith.subf %571, %703 : vector<8x128xf32>
    %705 = math.exp %704 : vector<8x128xf32>
    %706 = vector.extract_strided_slice %4 {offsets = [0, 0], sizes = [1, 1], strides = [1, 1]} : vector<1x8xf32> to vector<1x1xf32>
    %707 = vector.extract_strided_slice %705 {offsets = [0, 0], sizes = [1, 128], strides = [1, 1]} : vector<8x128xf32> to vector<1x128xf32>
    %708 = vector.broadcast %706 : vector<1x1xf32> to vector<1x128xf32>
    %709 = arith.mulf %708, %707 : vector<1x128xf32>
    %710 = vector.extract_strided_slice %4 {offsets = [0, 1], sizes = [1, 1], strides = [1, 1]} : vector<1x8xf32> to vector<1x1xf32>
    %711 = vector.extract_strided_slice %705 {offsets = [1, 0], sizes = [1, 128], strides = [1, 1]} : vector<8x128xf32> to vector<1x128xf32>
    %712 = vector.broadcast %710 : vector<1x1xf32> to vector<1x128xf32>
    %713 = arith.mulf %712, %711 : vector<1x128xf32>
    %714 = arith.addf %709, %713 : vector<1x128xf32>
    %715 = vector.extract_strided_slice %4 {offsets = [0, 2], sizes = [1, 1], strides = [1, 1]} : vector<1x8xf32> to vector<1x1xf32>
    %716 = vector.extract_strided_slice %705 {offsets = [2, 0], sizes = [1, 128], strides = [1, 1]} : vector<8x128xf32> to vector<1x128xf32>
    %717 = vector.broadcast %715 : vector<1x1xf32> to vector<1x128xf32>
    %718 = arith.mulf %717, %716 : vector<1x128xf32>
    %719 = arith.addf %714, %718 : vector<1x128xf32>
    %720 = vector.extract_strided_slice %4 {offsets = [0, 3], sizes = [1, 1], strides = [1, 1]} : vector<1x8xf32> to vector<1x1xf32>
    %721 = vector.extract_strided_slice %705 {offsets = [3, 0], sizes = [1, 128], strides = [1, 1]} : vector<8x128xf32> to vector<1x128xf32>
    %722 = vector.broadcast %720 : vector<1x1xf32> to vector<1x128xf32>
    %723 = arith.mulf %722, %721 : vector<1x128xf32>
    %724 = arith.addf %719, %723 : vector<1x128xf32>
    %725 = vector.extract_strided_slice %4 {offsets = [0, 4], sizes = [1, 1], strides = [1, 1]} : vector<1x8xf32> to vector<1x1xf32>
    %726 = vector.extract_strided_slice %705 {offsets = [4, 0], sizes = [1, 128], strides = [1, 1]} : vector<8x128xf32> to vector<1x128xf32>
    %727 = vector.broadcast %725 : vector<1x1xf32> to vector<1x128xf32>
    %728 = arith.mulf %727, %726 : vector<1x128xf32>
    %729 = arith.addf %724, %728 : vector<1x128xf32>
    %730 = vector.extract_strided_slice %4 {offsets = [0, 5], sizes = [1, 1], strides = [1, 1]} : vector<1x8xf32> to vector<1x1xf32>
    %731 = vector.extract_strided_slice %705 {offsets = [5, 0], sizes = [1, 128], strides = [1, 1]} : vector<8x128xf32> to vector<1x128xf32>
    %732 = vector.broadcast %730 : vector<1x1xf32> to vector<1x128xf32>
    %733 = arith.mulf %732, %731 : vector<1x128xf32>
    %734 = arith.addf %729, %733 : vector<1x128xf32>
    %735 = vector.extract_strided_slice %4 {offsets = [0, 6], sizes = [1, 1], strides = [1, 1]} : vector<1x8xf32> to vector<1x1xf32>
    %736 = vector.extract_strided_slice %705 {offsets = [6, 0], sizes = [1, 128], strides = [1, 1]} : vector<8x128xf32> to vector<1x128xf32>
    %737 = vector.broadcast %735 : vector<1x1xf32> to vector<1x128xf32>
    %738 = arith.mulf %737, %736 : vector<1x128xf32>
    %739 = arith.addf %734, %738 : vector<1x128xf32>
    %740 = vector.extract_strided_slice %4 {offsets = [0, 7], sizes = [1, 1], strides = [1, 1]} : vector<1x8xf32> to vector<1x1xf32>
    %741 = vector.extract_strided_slice %705 {offsets = [7, 0], sizes = [1, 128], strides = [1, 1]} : vector<8x128xf32> to vector<1x128xf32>
    %742 = vector.broadcast %740 : vector<1x1xf32> to vector<1x128xf32>
    %743 = arith.mulf %742, %741 : vector<1x128xf32>
    %744 = arith.addf %739, %743 : vector<1x128xf32>
    %745 = arith.mulf %705, %700 : vector<8x128xf32>
    %746 = vector.extract_strided_slice %4 {offsets = [0, 0], sizes = [1, 1], strides = [1, 1]} : vector<1x8xf32> to vector<1x1xf32>
    %747 = vector.extract_strided_slice %745 {offsets = [0, 0], sizes = [1, 128], strides = [1, 1]} : vector<8x128xf32> to vector<1x128xf32>
    %748 = vector.broadcast %746 : vector<1x1xf32> to vector<1x128xf32>
    %749 = arith.mulf %748, %747 : vector<1x128xf32>
    %750 = vector.extract_strided_slice %4 {offsets = [0, 1], sizes = [1, 1], strides = [1, 1]} : vector<1x8xf32> to vector<1x1xf32>
    %751 = vector.extract_strided_slice %745 {offsets = [1, 0], sizes = [1, 128], strides = [1, 1]} : vector<8x128xf32> to vector<1x128xf32>
    %752 = vector.broadcast %750 : vector<1x1xf32> to vector<1x128xf32>
    %753 = arith.mulf %752, %751 : vector<1x128xf32>
    %754 = arith.addf %749, %753 : vector<1x128xf32>
    %755 = vector.extract_strided_slice %4 {offsets = [0, 2], sizes = [1, 1], strides = [1, 1]} : vector<1x8xf32> to vector<1x1xf32>
    %756 = vector.extract_strided_slice %745 {offsets = [2, 0], sizes = [1, 128], strides = [1, 1]} : vector<8x128xf32> to vector<1x128xf32>
    %757 = vector.broadcast %755 : vector<1x1xf32> to vector<1x128xf32>
    %758 = arith.mulf %757, %756 : vector<1x128xf32>
    %759 = arith.addf %754, %758 : vector<1x128xf32>
    %760 = vector.extract_strided_slice %4 {offsets = [0, 3], sizes = [1, 1], strides = [1, 1]} : vector<1x8xf32> to vector<1x1xf32>
    %761 = vector.extract_strided_slice %745 {offsets = [3, 0], sizes = [1, 128], strides = [1, 1]} : vector<8x128xf32> to vector<1x128xf32>
    %762 = vector.broadcast %760 : vector<1x1xf32> to vector<1x128xf32>
    %763 = arith.mulf %762, %761 : vector<1x128xf32>
    %764 = arith.addf %759, %763 : vector<1x128xf32>
    %765 = vector.extract_strided_slice %4 {offsets = [0, 4], sizes = [1, 1], strides = [1, 1]} : vector<1x8xf32> to vector<1x1xf32>
    %766 = vector.extract_strided_slice %745 {offsets = [4, 0], sizes = [1, 128], strides = [1, 1]} : vector<8x128xf32> to vector<1x128xf32>
    %767 = vector.broadcast %765 : vector<1x1xf32> to vector<1x128xf32>
    %768 = arith.mulf %767, %766 : vector<1x128xf32>
    %769 = arith.addf %764, %768 : vector<1x128xf32>
    %770 = vector.extract_strided_slice %4 {offsets = [0, 5], sizes = [1, 1], strides = [1, 1]} : vector<1x8xf32> to vector<1x1xf32>
    %771 = vector.extract_strided_slice %745 {offsets = [5, 0], sizes = [1, 128], strides = [1, 1]} : vector<8x128xf32> to vector<1x128xf32>
    %772 = vector.broadcast %770 : vector<1x1xf32> to vector<1x128xf32>
    %773 = arith.mulf %772, %771 : vector<1x128xf32>
    %774 = arith.addf %769, %773 : vector<1x128xf32>
    %775 = vector.extract_strided_slice %4 {offsets = [0, 6], sizes = [1, 1], strides = [1, 1]} : vector<1x8xf32> to vector<1x1xf32>
    %776 = vector.extract_strided_slice %745 {offsets = [6, 0], sizes = [1, 128], strides = [1, 1]} : vector<8x128xf32> to vector<1x128xf32>
    %777 = vector.broadcast %775 : vector<1x1xf32> to vector<1x128xf32>
    %778 = arith.mulf %777, %776 : vector<1x128xf32>
    %779 = arith.addf %774, %778 : vector<1x128xf32>
    %780 = vector.extract_strided_slice %4 {offsets = [0, 7], sizes = [1, 1], strides = [1, 1]} : vector<1x8xf32> to vector<1x1xf32>
    %781 = vector.extract_strided_slice %745 {offsets = [7, 0], sizes = [1, 128], strides = [1, 1]} : vector<8x128xf32> to vector<1x128xf32>
    %782 = vector.broadcast %780 : vector<1x1xf32> to vector<1x128xf32>
    %783 = arith.mulf %782, %781 : vector<1x128xf32>
    %784 = arith.addf %779, %783 : vector<1x128xf32>
    %cst_68 = arith.constant 1.000000e+00 : f32
    %785 = vector.broadcast %cst_68 : f32 to vector<1x128xf32>
    %786 = arith.divf %785, %744 : vector<1x128xf32>
    %787 = arith.mulf %784, %786 : vector<1x128xf32>
    %cst_69 = arith.constant 0.999998986 : f32
    %788 = vector.broadcast %cst_69 : f32 to vector<1x128xf32>
    %789 = arith.mulf %787, %788 : vector<1x128xf32>
    %cst_70 = arith.constant 5.000000e-07 : f32
    %790 = vector.broadcast %cst_70 : f32 to vector<1x128xf32>
    %791 = arith.addf %789, %790 : vector<1x128xf32>
    %792 = math.log %791 : vector<1x128xf32>
    %cst_71 = arith.constant 1.000000e+00 : f32
    %793 = vector.broadcast %cst_71 : f32 to vector<1x128xf32>
    %794 = arith.subf %793, %791 : vector<1x128xf32>
    %795 = math.log %794 : vector<1x128xf32>
    %796 = arith.subf %792, %795 : vector<1x128xf32>
    %cst_72 = arith.constant 0.999997973 : f32
    %797 = vector.broadcast %cst_72 : f32 to vector<8x128xf32>
    %798 = arith.mulf %584, %797 : vector<8x128xf32>
    %799 = arith.mulf %705, %798 : vector<8x128xf32>
    %cst_73 = arith.constant 1.000000e+00 : f32
    %800 = vector.broadcast %cst_73 : f32 to vector<8x128xf32>
    %801 = arith.subf %800, %700 : vector<8x128xf32>
    %802 = arith.mulf %700, %801 : vector<8x128xf32>
    %803 = arith.mulf %799, %802 : vector<8x128xf32>
    %804 = arith.addf %572, %568 : vector<8x128xf32>
    %cst_74 = arith.constant dense<0xFF800000> : vector<128xf32>
    %805 = vector.multi_reduction <maximumf>, %804, %cst_74 [0] : vector<8x128xf32> to vector<128xf32>
    %806 = vector.shape_cast %805 : vector<128xf32> to vector<1x128xf32>
    %807 = vector.broadcast %806 : vector<1x128xf32> to vector<8x128xf32>
    %808 = arith.subf %804, %807 : vector<8x128xf32>
    %809 = math.exp %808 : vector<8x128xf32>
    %810 = vector.extract_strided_slice %3 {offsets = [0, 0], sizes = [8, 1], strides = [1, 1]} : vector<8x8xf32> to vector<8x1xf32>
    %811 = vector.extract_strided_slice %809 {offsets = [0, 0], sizes = [1, 128], strides = [1, 1]} : vector<8x128xf32> to vector<1x128xf32>
    %812 = vector.broadcast %810 : vector<8x1xf32> to vector<8x128xf32>
    %813 = vector.broadcast %811 : vector<1x128xf32> to vector<8x128xf32>
    %814 = arith.mulf %812, %813 : vector<8x128xf32>
    %815 = vector.extract_strided_slice %3 {offsets = [0, 1], sizes = [8, 1], strides = [1, 1]} : vector<8x8xf32> to vector<8x1xf32>
    %816 = vector.extract_strided_slice %809 {offsets = [1, 0], sizes = [1, 128], strides = [1, 1]} : vector<8x128xf32> to vector<1x128xf32>
    %817 = vector.broadcast %815 : vector<8x1xf32> to vector<8x128xf32>
    %818 = vector.broadcast %816 : vector<1x128xf32> to vector<8x128xf32>
    %819 = arith.mulf %817, %818 : vector<8x128xf32>
    %820 = arith.addf %814, %819 : vector<8x128xf32>
    %821 = vector.extract_strided_slice %3 {offsets = [0, 2], sizes = [8, 1], strides = [1, 1]} : vector<8x8xf32> to vector<8x1xf32>
    %822 = vector.extract_strided_slice %809 {offsets = [2, 0], sizes = [1, 128], strides = [1, 1]} : vector<8x128xf32> to vector<1x128xf32>
    %823 = vector.broadcast %821 : vector<8x1xf32> to vector<8x128xf32>
    %824 = vector.broadcast %822 : vector<1x128xf32> to vector<8x128xf32>
    %825 = arith.mulf %823, %824 : vector<8x128xf32>
    %826 = arith.addf %820, %825 : vector<8x128xf32>
    %827 = vector.extract_strided_slice %3 {offsets = [0, 3], sizes = [8, 1], strides = [1, 1]} : vector<8x8xf32> to vector<8x1xf32>
    %828 = vector.extract_strided_slice %809 {offsets = [3, 0], sizes = [1, 128], strides = [1, 1]} : vector<8x128xf32> to vector<1x128xf32>
    %829 = vector.broadcast %827 : vector<8x1xf32> to vector<8x128xf32>
    %830 = vector.broadcast %828 : vector<1x128xf32> to vector<8x128xf32>
    %831 = arith.mulf %829, %830 : vector<8x128xf32>
    %832 = arith.addf %826, %831 : vector<8x128xf32>
    %833 = vector.extract_strided_slice %3 {offsets = [0, 4], sizes = [8, 1], strides = [1, 1]} : vector<8x8xf32> to vector<8x1xf32>
    %834 = vector.extract_strided_slice %809 {offsets = [4, 0], sizes = [1, 128], strides = [1, 1]} : vector<8x128xf32> to vector<1x128xf32>
    %835 = vector.broadcast %833 : vector<8x1xf32> to vector<8x128xf32>
    %836 = vector.broadcast %834 : vector<1x128xf32> to vector<8x128xf32>
    %837 = arith.mulf %835, %836 : vector<8x128xf32>
    %838 = arith.addf %832, %837 : vector<8x128xf32>
    %839 = vector.extract_strided_slice %3 {offsets = [0, 5], sizes = [8, 1], strides = [1, 1]} : vector<8x8xf32> to vector<8x1xf32>
    %840 = vector.extract_strided_slice %809 {offsets = [5, 0], sizes = [1, 128], strides = [1, 1]} : vector<8x128xf32> to vector<1x128xf32>
    %841 = vector.broadcast %839 : vector<8x1xf32> to vector<8x128xf32>
    %842 = vector.broadcast %840 : vector<1x128xf32> to vector<8x128xf32>
    %843 = arith.mulf %841, %842 : vector<8x128xf32>
    %844 = arith.addf %838, %843 : vector<8x128xf32>
    %845 = vector.extract_strided_slice %3 {offsets = [0, 6], sizes = [8, 1], strides = [1, 1]} : vector<8x8xf32> to vector<8x1xf32>
    %846 = vector.extract_strided_slice %809 {offsets = [6, 0], sizes = [1, 128], strides = [1, 1]} : vector<8x128xf32> to vector<1x128xf32>
    %847 = vector.broadcast %845 : vector<8x1xf32> to vector<8x128xf32>
    %848 = vector.broadcast %846 : vector<1x128xf32> to vector<8x128xf32>
    %849 = arith.mulf %847, %848 : vector<8x128xf32>
    %850 = arith.addf %844, %849 : vector<8x128xf32>
    %851 = vector.extract_strided_slice %3 {offsets = [0, 7], sizes = [8, 1], strides = [1, 1]} : vector<8x8xf32> to vector<8x1xf32>
    %852 = vector.extract_strided_slice %809 {offsets = [7, 0], sizes = [1, 128], strides = [1, 1]} : vector<8x128xf32> to vector<1x128xf32>
    %853 = vector.broadcast %851 : vector<8x1xf32> to vector<8x128xf32>
    %854 = vector.broadcast %852 : vector<1x128xf32> to vector<8x128xf32>
    %855 = arith.mulf %853, %854 : vector<8x128xf32>
    %856 = arith.addf %850, %855 : vector<8x128xf32>
    %857 = arith.mulf %803, %686 : vector<8x128xf32>
    %858 = arith.mulf %857, %856 : vector<8x128xf32>
    %859 = vector.extract_strided_slice %4 {offsets = [0, 0], sizes = [1, 1], strides = [1, 1]} : vector<1x8xf32> to vector<1x1xf32>
    %860 = vector.extract_strided_slice %858 {offsets = [0, 0], sizes = [1, 128], strides = [1, 1]} : vector<8x128xf32> to vector<1x128xf32>
    %861 = vector.broadcast %859 : vector<1x1xf32> to vector<1x128xf32>
    %862 = arith.mulf %861, %860 : vector<1x128xf32>
    %863 = vector.extract_strided_slice %4 {offsets = [0, 1], sizes = [1, 1], strides = [1, 1]} : vector<1x8xf32> to vector<1x1xf32>
    %864 = vector.extract_strided_slice %858 {offsets = [1, 0], sizes = [1, 128], strides = [1, 1]} : vector<8x128xf32> to vector<1x128xf32>
    %865 = vector.broadcast %863 : vector<1x1xf32> to vector<1x128xf32>
    %866 = arith.mulf %865, %864 : vector<1x128xf32>
    %867 = arith.addf %862, %866 : vector<1x128xf32>
    %868 = vector.extract_strided_slice %4 {offsets = [0, 2], sizes = [1, 1], strides = [1, 1]} : vector<1x8xf32> to vector<1x1xf32>
    %869 = vector.extract_strided_slice %858 {offsets = [2, 0], sizes = [1, 128], strides = [1, 1]} : vector<8x128xf32> to vector<1x128xf32>
    %870 = vector.broadcast %868 : vector<1x1xf32> to vector<1x128xf32>
    %871 = arith.mulf %870, %869 : vector<1x128xf32>
    %872 = arith.addf %867, %871 : vector<1x128xf32>
    %873 = vector.extract_strided_slice %4 {offsets = [0, 3], sizes = [1, 1], strides = [1, 1]} : vector<1x8xf32> to vector<1x1xf32>
    %874 = vector.extract_strided_slice %858 {offsets = [3, 0], sizes = [1, 128], strides = [1, 1]} : vector<8x128xf32> to vector<1x128xf32>
    %875 = vector.broadcast %873 : vector<1x1xf32> to vector<1x128xf32>
    %876 = arith.mulf %875, %874 : vector<1x128xf32>
    %877 = arith.addf %872, %876 : vector<1x128xf32>
    %878 = vector.extract_strided_slice %4 {offsets = [0, 4], sizes = [1, 1], strides = [1, 1]} : vector<1x8xf32> to vector<1x1xf32>
    %879 = vector.extract_strided_slice %858 {offsets = [4, 0], sizes = [1, 128], strides = [1, 1]} : vector<8x128xf32> to vector<1x128xf32>
    %880 = vector.broadcast %878 : vector<1x1xf32> to vector<1x128xf32>
    %881 = arith.mulf %880, %879 : vector<1x128xf32>
    %882 = arith.addf %877, %881 : vector<1x128xf32>
    %883 = vector.extract_strided_slice %4 {offsets = [0, 5], sizes = [1, 1], strides = [1, 1]} : vector<1x8xf32> to vector<1x1xf32>
    %884 = vector.extract_strided_slice %858 {offsets = [5, 0], sizes = [1, 128], strides = [1, 1]} : vector<8x128xf32> to vector<1x128xf32>
    %885 = vector.broadcast %883 : vector<1x1xf32> to vector<1x128xf32>
    %886 = arith.mulf %885, %884 : vector<1x128xf32>
    %887 = arith.addf %882, %886 : vector<1x128xf32>
    %888 = vector.extract_strided_slice %4 {offsets = [0, 6], sizes = [1, 1], strides = [1, 1]} : vector<1x8xf32> to vector<1x1xf32>
    %889 = vector.extract_strided_slice %858 {offsets = [6, 0], sizes = [1, 128], strides = [1, 1]} : vector<8x128xf32> to vector<1x128xf32>
    %890 = vector.broadcast %888 : vector<1x1xf32> to vector<1x128xf32>
    %891 = arith.mulf %890, %889 : vector<1x128xf32>
    %892 = arith.addf %887, %891 : vector<1x128xf32>
    %893 = vector.extract_strided_slice %4 {offsets = [0, 7], sizes = [1, 1], strides = [1, 1]} : vector<1x8xf32> to vector<1x1xf32>
    %894 = vector.extract_strided_slice %858 {offsets = [7, 0], sizes = [1, 128], strides = [1, 1]} : vector<8x128xf32> to vector<1x128xf32>
    %895 = vector.broadcast %893 : vector<1x1xf32> to vector<1x128xf32>
    %896 = arith.mulf %895, %894 : vector<1x128xf32>
    %897 = arith.addf %892, %896 : vector<1x128xf32>
    %898 = arith.mulf %897, %786 : vector<1x128xf32>
    %899 = math.log %898 : vector<1x128xf32>
    %900 = arith.subf %806, %586 : vector<1x128xf32>
    %901 = arith.addf %899, %900 : vector<1x128xf32>
    %cst_75 = arith.constant -1.00000045E-6 : f32
    %902 = vector.broadcast %cst_75 : f32 to vector<1x128xf32>
    %903 = arith.addf %901, %902 : vector<1x128xf32>
    %904 = arith.addf %792, %795 : vector<1x128xf32>
    %905 = arith.subf %903, %904 : vector<1x128xf32>
    %c0_76 = arith.constant 0 : index
    %c0_77 = arith.constant 0 : index
    %906 = vector.load %arg9[%c0_76, %c0_77] : memref<1x128xf32, #tpu.memory_space<vmem>>, vector<1x128xf32>
    tpu.vector_store %arg9[%c0_76, %c0_77], %796 {strides = array<i32>} : memref<1x128xf32, #tpu.memory_space<vmem>>, vector<1x128xf32>,
    %c0_78 = arith.constant 0 : index
    %c0_79 = arith.constant 0 : index
    %907 = vector.load %arg10[%c0_78, %c0_79] : memref<1x128xf32, #tpu.memory_space<vmem>>, vector<1x128xf32>
    tpu.vector_store %arg10[%c0_78, %c0_79], %905 {strides = array<i32>} : memref<1x128xf32, #tpu.memory_space<vmem>>, vector<1x128xf32>,
    return
  }
  func.func @transform_0(%arg0: i32) -> (i32, i32) {
    %c0_i32 = arith.constant 0 : i32
    %c0_i32_0 = arith.constant 0 : i32
    return %c0_i32, %arg0 : i32, i32
  }
  func.func @transform_1(%arg0: i32) -> (i32, i32) {
    %c0_i32 = arith.constant 0 : i32
    %c0_i32_0 = arith.constant 0 : i32
    return %c0_i32, %arg0 : i32, i32
  }
  func.func @transform_2(%arg0: i32) -> (i32, i32) {
    %c0_i32 = arith.constant 0 : i32
    %c0_i32_0 = arith.constant 0 : i32
    %c0_i32_1 = arith.constant 0 : i32
    return %c0_i32, %c0_i32_0 : i32, i32
  }
  func.func @transform_3(%arg0: i32) -> (i32, i32) {
    %c0_i32 = arith.constant 0 : i32
    %c0_i32_0 = arith.constant 0 : i32
    %c0_i32_1 = arith.constant 0 : i32
    return %c0_i32, %c0_i32_0 : i32, i32
  }
  func.func @transform_4(%arg0: i32) -> (i32, i32) {
    %c0_i32 = arith.constant 0 : i32
    %c0_i32_0 = arith.constant 0 : i32
    %c0_i32_1 = arith.constant 0 : i32
    return %c0_i32, %c0_i32_0 : i32, i32
  }
  func.func @transform_5(%arg0: i32) -> (i32, i32) {
    %c0_i32 = arith.constant 0 : i32
    %c0_i32_0 = arith.constant 0 : i32
    %c0_i32_1 = arith.constant 0 : i32
    return %c0_i32, %c0_i32_0 : i32, i32
  }
  func.func @transform_6(%arg0: i32) -> (i32, i32) {
    %c0_i32 = arith.constant 0 : i32
    %c0_i32_0 = arith.constant 0 : i32
    %c0_i32_1 = arith.constant 0 : i32
    return %c0_i32, %c0_i32_0 : i32, i32
  }
  func.func @transform_7(%arg0: i32) -> (i32, i32) {
    %c0_i32 = arith.constant 0 : i32
    %c0_i32_0 = arith.constant 0 : i32
    %c0_i32_1 = arith.constant 0 : i32
    return %c0_i32, %c0_i32_0 : i32, i32
  }
  func.func @transform_8(%arg0: i32) -> (i32, i32) {
    %c0_i32 = arith.constant 0 : i32
    %c0_i32_0 = arith.constant 0 : i32
    return %c0_i32, %arg0 : i32, i32
  }
  func.func @transform_9(%arg0: i32) -> (i32, i32) {
    %c0_i32 = arith.constant 0 : i32
    %c0_i32_0 = arith.constant 0 : i32
    return %c0_i32, %arg0 : i32, i32
  }
}

</mosaic_0001>

<llo_original>
// kernel: tpu_custom_call.1
$region0: #{tpu_custom_call.1}
  #allocation0 [shape = 'u32[]', space=smem, size = 0x4, offset = 0x4, fixed_abs, tag = 'smem constant byte address 0x4 - core index']
  #allocation1 [shape = 'u32[72,128]{1,0:T(1,128)}', space=vmem, size = 0x9000, scoped, tag = 'internal scratch']
  %s0 = inlined_call_operand.hbm [shape: f32[1,256], index: 0, kind: input, shape index: {}]
  %s1 = inlined_call_operand.hbm [shape: f32[88,256], index: 1, kind: input, shape index: {}]
  %s2 = inlined_call_operand.vmem [shape: f32[8,1], index: 2, kind: input, shape index: {}]
  %s3 = inlined_call_operand.vmem [shape: f32[8,8], index: 3, kind: input, shape index: {}]
  %s4 = inlined_call_operand.hbm [shape: f32[8,8], index: 4, kind: input, shape index: {}]
  %s5 = inlined_call_operand.hbm [shape: f32[8,8], index: 5, kind: input, shape index: {}]
  %s6 = inlined_call_operand.hbm [shape: f32[8,8], index: 6, kind: input, shape index: {}]
  %s7 = inlined_call_operand.vmem [shape: f32[1,8], index: 7, kind: input, shape index: {}]
  %s8 = inlined_call_operand.hbm [shape: f32[1,256], index: 8, kind: output, shape index: {0}]
  %s9 = inlined_call_operand.hbm [shape: f32[1,256], index: 9, kind: output, shape index: {1}]
  %10 = xla_tuple %s8, %s9
  %s11 = sld [smem:[#allocation0]]
  $region93: #{tpu_custom_call.1} parent=0
    _
  %s13 = ssub.s32 1, %s11
  %s14 = scalar_select 0, %s13, %s11
  $region1: #{tpu_custom_call.1} parent=0
    #allocation2 [shape = 'u8[1024]{0}', space=vmem, size = 0x400, scoped, tag = 'input window, operand 0']
    #allocation3 [shape = 's32[2]{0}', space=sflag, size = 0x8, scoped, tag = 'scoped memory for tpu_custom_call.1']
    #allocation4 [shape = 's32[2]{0}', space=sflag, size = 0x8, scoped, tag = 'scoped memory for tpu_custom_call.1']
    #allocation5 [shape = 'u8[90112]{0}', space=vmem, size = 0x16000, scoped, tag = 'input window, operand 1']
    #allocation6 [shape = 's32[2]{0}', space=sflag, size = 0x8, scoped, tag = 'scoped memory for tpu_custom_call.1']
    #allocation7 [shape = 'u8[4096]{0}', space=vmem, size = 0x1000, scoped, tag = 'input window, operand 4, single buffered']
    #allocation8 [shape = 'u8[4096]{0}', space=vmem, size = 0x1000, scoped, tag = 'input window, operand 5, single buffered']
    #allocation9 [shape = 's32[1]{0}', space=sflag, size = 0x4, scoped, tag = 'scoped memory for tpu_custom_call.1']
    #allocation10 [shape = 'u8[4096]{0}', space=vmem, size = 0x1000, scoped, tag = 'input window, operand 6, single buffered']
    #allocation11 [shape = 'u8[1024]{0}', space=vmem, size = 0x400, scoped, tag = 'output window, operand 0']
    #allocation12 [shape = 'u8[1024]{0}', space=vmem, size = 0x400, scoped, tag = 'output window, operand 1']
    #allocation13 [shape = 's32[2]{0}', space=sflag, size = 0x8, scoped, tag = 'scoped memory for tpu_custom_call.1']
    %15 = vsyncpa [#allocation3], 0
    %s16 = scalar_lea.sflag [#allocation3], 1
    %17 = vsyncpa %s16, 0
    %18 = vsyncpa [#allocation6], 0
    %s19 = scalar_lea.sflag [#allocation6], 1
    %20 = vsyncpa %s19, 0
    %21 = vsyncpa [#allocation9], 0
    %22 = vsyncpa [#allocation4], 0
    %s23 = scalar_lea.sflag [#allocation4], 1
    %24 = vsyncpa %s23, 0
    %25 = vsyncpa [#allocation13], 0
    %s26 = scalar_lea.sflag [#allocation13], 1
    %27 = vsyncpa %s26, 0
    loop: start=0, step=1, limit=4
    $region2: #{tpu_custom_call.1} parent=1 // loop_pre_header
      _
    $region3: #{tpu_custom_call.1} parent=1 // loop_header
      %s29 = sphi 0, %s33
      %p30 = scmp.ge.s32.totalorder %s29, 4
      %s39 = sphi 0, %s41
      %s42 = sphi 0, %s39
      %s43 = sphi 0, %s42
      %s59 = sphi 0, %s43
      %s65 = sphi 0, %s67
      %s68 = sphi 0, %s65
      %s69 = sphi 0, %s68
      %s85 = sphi 0, %s69
      %s89 = sphi 0, %s89
      %s91 = sphi 0, %s89
      %s92 = sphi 0, %s91
      %s106 = sphi 0, %s92
      %s110 = sphi 0, %s110
      %s112 = sphi 0, %s110
      %s113 = sphi 0, %s112
      %s127 = sphi 0, %s113
      %s131 = sphi 0, %s131
      %s133 = sphi 0, %s131
      %s134 = sphi 0, %s133
      %s148 = sphi 0, %s134
      %s152 = sphi 0, %s152
      %s154 = sphi 0, %s152
      %s155 = sphi 0, %s154
      %s169 = sphi 0, %s155
      %s173 = sphi 0, %s173
      %s175 = sphi 0, %s173
      %s176 = sphi 0, %s175
      %s190 = sphi 0, %s176
      %s194 = sphi 0, %s194
      %s196 = sphi 0, %s194
      %s197 = sphi 0, %s196
      %s211 = sphi 0, %s197
      %s217 = sphi 0, %s219
      %s220 = sphi 0, %s217
      %s221 = sphi 0, %s220
      %s237 = sphi 0, %s221
      %s243 = sphi 0, %s245
      %s246 = sphi 0, %s243
      %s247 = sphi 0, %s246
      %s263 = sphi 0, %s247
    $region4: #{tpu_custom_call.1} parent=1 // loop_header_branch
      %32 = sbr.rel (%p30) target = $region8
    $region5: #{tpu_custom_call.1} parent=1 // loop_body
      %s34 = ssub.s32 %s29, 1
      %s35 = ssub.s32 %s29, 2
      %s36 = sadd.s32 %s29, 1
      %s37 = ssub.s32 %s29, %s36
      %p38 = scmp.eq.s32.totalorder %s37, 0
      %s40 = sadd.s32 %s39, 1
      %s41 = scalar_select %p38, %s39, %s40
      %p44 = pneg %p38
      %p45 = scmp.eq.s32.totalorder %s29, 1
      %p46 = por %p44, %p45
      %p47 = scmp.ne.s32.totalorder %s39, %s42
      %p48 = scmp.eq.s32.totalorder %s29, 0
      %p49 = por %p47, %p48
      %p50 = scmp.ne.s32.totalorder %s39, %s42
      %p51 = scmp.eq.s32.totalorder %s34, 1
      %p52 = por %p50, %p51
      %p53 = scmp.ne.s32.totalorder %s42, %s43
      %p54 = scmp.eq.s32.totalorder %s34, 0
      %p55 = por %p53, %p54
      %p56 = scmp.ne.s32.totalorder %s42, %s43
      %p57 = scmp.eq.s32.totalorder %s35, 1
      %p58 = por %p56, %p57
      %p60 = scmp.ne.s32.totalorder %s43, %s59
      %p61 = scmp.eq.s32.totalorder %s35, 0
      %p62 = por %p60, %p61
      %s63 = ssub.s32 %s29, %s36
      %p64 = scmp.eq.s32.totalorder %s63, 0
      %s66 = sadd.s32 %s65, 1
      %s67 = scalar_select %p64, %s65, %s66
      %p70 = pneg %p64
      %p71 = scmp.eq.s32.totalorder %s29, 1
      %p72 = por %p70, %p71
      %p73 = scmp.ne.s32.totalorder %s65, %s68
      %p74 = scmp.eq.s32.totalorder %s29, 0
      %p75 = por %p73, %p74
      %p76 = scmp.ne.s32.totalorder %s65, %s68
      %p77 = scmp.eq.s32.totalorder %s34, 1
      %p78 = por %p76, %p77
      %p79 = scmp.ne.s32.totalorder %s68, %s69
      %p80 = scmp.eq.s32.totalorder %s34, 0
      %p81 = por %p79, %p80
      %p82 = scmp.ne.s32.totalorder %s68, %s69
      %p83 = scmp.eq.s32.totalorder %s35, 1
      %p84 = por %p82, %p83
      %p86 = scmp.ne.s32.totalorder %s69, %s85
      %p87 = scmp.eq.s32.totalorder %s35, 0
      %p88 = por %p86, %p87
      %s90 = sadd.s32 %s89, 1
      %p93 = scmp.eq.s32.totalorder %s29, 1
      %p94 = scmp.ne.s32.totalorder %s89, %s91
      %p95 = scmp.eq.s32.totalorder %s29, 0
      %p96 = por %p94, %p95
      %p97 = scmp.ne.s32.totalorder %s89, %s91
      %p98 = scmp.eq.s32.totalorder %s34, 1
      %p99 = por %p97, %p98
      %p100 = scmp.ne.s32.totalorder %s91, %s92
      %p101 = scmp.eq.s32.totalorder %s34, 0
      %p102 = por %p100, %p101
      %p103 = scmp.ne.s32.totalorder %s91, %s92
      %p104 = scmp.eq.s32.totalorder %s35, 1
      %p105 = por %p103, %p104
      %p107 = scmp.ne.s32.totalorder %s92, %s106
      %p108 = scmp.eq.s32.totalorder %s35, 0
      %p109 = por %p107, %p108
      %s111 = sadd.s32 %s110, 1
      %p114 = scmp.eq.s32.totalorder %s29, 1
      %p115 = scmp.ne.s32.totalorder %s110, %s112
      %p116 = scmp.eq.s32.totalorder %s29, 0
      %p117 = por %p115, %p116
      %p118 = scmp.ne.s32.totalorder %s110, %s112
      %p119 = scmp.eq.s32.totalorder %s34, 1
      %p120 = por %p118, %p119
      %p121 = scmp.ne.s32.totalorder %s112, %s113
      %p122 = scmp.eq.s32.totalorder %s34, 0
      %p123 = por %p121, %p122
      %p124 = scmp.ne.s32.totalorder %s112, %s113
      %p125 = scmp.eq.s32.totalorder %s35, 1
      %p126 = por %p124, %p125
      %p128 = scmp.ne.s32.totalorder %s113, %s127
      %p129 = scmp.eq.s32.totalorder %s35, 0
      %p130 = por %p128, %p129
      %s132 = sadd.s32 %s131, 1
      %p135 = scmp.eq.s32.totalorder %s29, 1
      %p136 = scmp.ne.s32.totalorder %s131, %s133
      %p137 = scmp.eq.s32.totalorder %s29, 0
      %p138 = por %p136, %p137
      %p139 = scmp.ne.s32.totalorder %s131, %s133
      %p140 = scmp.eq.s32.totalorder %s34, 1
      %p141 = por %p139, %p140
      %p142 = scmp.ne.s32.totalorder %s133, %s134
      %p143 = scmp.eq.s32.totalorder %s34, 0
      %p144 = por %p142, %p143
      %p145 = scmp.ne.s32.totalorder %s133, %s134
      %p146 = scmp.eq.s32.totalorder %s35, 1
      %p147 = por %p145, %p146
      %p149 = scmp.ne.s32.totalorder %s134, %s148
      %p150 = scmp.eq.s32.totalorder %s35, 0
      %p151 = por %p149, %p150
      %s153 = sadd.s32 %s152, 1
      %p156 = scmp.eq.s32.totalorder %s29, 1
      %p157 = scmp.ne.s32.totalorder %s152, %s154
      %p158 = scmp.eq.s32.totalorder %s29, 0
      %p159 = por %p157, %p158
      %p160 = scmp.ne.s32.totalorder %s152, %s154
      %p161 = scmp.eq.s32.totalorder %s34, 1
      %p162 = por %p160, %p161
      %p163 = scmp.ne.s32.totalorder %s154, %s155
      %p164 = scmp.eq.s32.totalorder %s34, 0
      %p165 = por %p163, %p164
      %p166 = scmp.ne.s32.totalorder %s154, %s155
      %p167 = scmp.eq.s32.totalorder %s35, 1
      %p168 = por %p166, %p167
      %p170 = scmp.ne.s32.totalorder %s155, %s169
      %p171 = scmp.eq.s32.totalorder %s35, 0
      %p172 = por %p170, %p171
      %s174 = sadd.s32 %s173, 1
      %p177 = scmp.eq.s32.totalorder %s29, 1
      %p178 = scmp.ne.s32.totalorder %s173, %s175
      %p179 = scmp.eq.s32.totalorder %s29, 0
      %p180 = por %p178, %p179
      %p181 = scmp.ne.s32.totalorder %s173, %s175
      %p182 = scmp.eq.s32.totalorder %s34, 1
      %p183 = por %p181, %p182
      %p184 = scmp.ne.s32.totalorder %s175, %s176
      %p185 = scmp.eq.s32.totalorder %s34, 0
      %p186 = por %p184, %p185
      %p187 = scmp.ne.s32.totalorder %s175, %s176
      %p188 = scmp.eq.s32.totalorder %s35, 1
      %p189 = por %p187, %p188
      %p191 = scmp.ne.s32.totalorder %s176, %s190
      %p192 = scmp.eq.s32.totalorder %s35, 0
      %p193 = por %p191, %p192
      %s195 = sadd.s32 %s194, 1
      %p198 = scmp.eq.s32.totalorder %s29, 1
      %p199 = scmp.ne.s32.totalorder %s194, %s196
      %p200 = scmp.eq.s32.totalorder %s29, 0
      %p201 = por %p199, %p200
      %p202 = scmp.ne.s32.totalorder %s194, %s196
      %p203 = scmp.eq.s32.totalorder %s34, 1
      %p204 = por %p202, %p203
      %p205 = scmp.ne.s32.totalorder %s196, %s197
      %p206 = scmp.eq.s32.totalorder %s34, 0
      %p207 = por %p205, %p206
      %p208 = scmp.ne.s32.totalorder %s196, %s197
      %p209 = scmp.eq.s32.totalorder %s35, 1
      %p210 = por %p208, %p209
      %p212 = scmp.ne.s32.totalorder %s197, %s211
      %p213 = scmp.eq.s32.totalorder %s35, 0
      %p214 = por %p212, %p213
      %s215 = ssub.s32 %s29, %s36
      %p216 = scmp.eq.s32.totalorder %s215, 0
      %s218 = sadd.s32 %s217, 1
      %s219 = scalar_select %p216, %s217, %s218
      %p222 = pneg %p216
      %p223 = scmp.eq.s32.totalorder %s29, 1
      %p224 = por %p222, %p223
      %p225 = scmp.ne.s32.totalorder %s217, %s220
      %p226 = scmp.eq.s32.totalorder %s29, 0
      %p227 = por %p225, %p226
      %p228 = scmp.ne.s32.totalorder %s217, %s220
      %p229 = scmp.eq.s32.totalorder %s34, 1
      %p230 = por %p228, %p229
      %p231 = scmp.ne.s32.totalorder %s220, %s221
      %p232 = scmp.eq.s32.totalorder %s34, 0
      %p233 = por %p231, %p232
      %p234 = scmp.ne.s32.totalorder %s220, %s221
      %p235 = scmp.eq.s32.totalorder %s35, 1
      %p236 = por %p234, %p235
      %p238 = scmp.ne.s32.totalorder %s221, %s237
      %p239 = scmp.eq.s32.totalorder %s35, 0
      %p240 = por %p238, %p239
      %s241 = ssub.s32 %s29, %s36
      %p242 = scmp.eq.s32.totalorder %s241, 0
      %s244 = sadd.s32 %s243, 1
      %s245 = scalar_select %p242, %s243, %s244
      %p248 = pneg %p242
      %p249 = scmp.eq.s32.totalorder %s29, 1
      %p250 = por %p248, %p249
      %p251 = scmp.ne.s32.totalorder %s243, %s246
      %p252 = scmp.eq.s32.totalorder %s29, 0
      %p253 = por %p251, %p252
      %p254 = scmp.ne.s32.totalorder %s243, %s246
      %p255 = scmp.eq.s32.totalorder %s34, 1
      %p256 = por %p254, %p255
      %p257 = scmp.ne.s32.totalorder %s246, %s247
      %p258 = scmp.eq.s32.totalorder %s34, 0
      %p259 = por %p257, %p258
      %p260 = scmp.ne.s32.totalorder %s246, %s247
      %p261 = scmp.eq.s32.totalorder %s35, 1
      %p262 = por %p260, %p261
      %p264 = scmp.ne.s32.totalorder %s247, %s263
      %p265 = scmp.eq.s32.totalorder %s35, 0
      %p266 = por %p264, %p265
      %p267 = scmp.le.s32.totalorder 1, %s29
      %p268 = scmp.lt.s32.totalorder %s29, 3
      %p269 = pnand %p267, %p268
      %p270 = pneg %p269
      // Predicated region
      $region9: #{tpu_custom_call.1} parent=5 // pred_check
        _
      $region10: #{tpu_custom_call.1} parent=5 // pred_check_branch
        %272 = sbr.rel (%p269) target = $region12
      $region11: #{tpu_custom_call.1} parent=5 // pred_region
        %s273 = ssub.s32 %s29, 1
        // Predicated region
        $region13: #{tpu_custom_call.1} parent=11 // pred_check
          %p274 = pneg %p102
        $region14: #{tpu_custom_call.1} parent=11 // pred_check_branch
          %276 = sbr.rel (%p274) target = $region16
        $region15: #{tpu_custom_call.1} parent=11 // pred_region
          _
        $region16: #{tpu_custom_call.1} parent=11 // pred_fallthru
          _
        // Predicated region
        $region17: #{tpu_custom_call.1} parent=11 // pred_check
          %p277 = pneg %p123
        $region18: #{tpu_custom_call.1} parent=11 // pred_check_branch
          %279 = sbr.rel (%p277) target = $region20
        $region19: #{tpu_custom_call.1} parent=11 // pred_region
          _
        $region20: #{tpu_custom_call.1} parent=11 // pred_fallthru
          _
        // Predicated region
        $region21: #{tpu_custom_call.1} parent=11 // pred_check
          %p280 = pneg %p144
        $region22: #{tpu_custom_call.1} parent=11 // pred_check_branch
          %282 = sbr.rel (%p280) target = $region24
        $region23: #{tpu_custom_call.1} parent=11 // pred_region
          %284 = vsyncadd [#allocation6], 0
          %s286 = sshll.u32 %s4, 4
          %s287 = int_to_ptr.hbm [resolvable:$true] %s286
          %s288 = sshll.u32 [#allocation7], 4
          %s289 = int_to_ptr.vmem [resolvable:$true] %s288
          %291 = dma.hbm_to_vmem [thread:$0]  %s287, 128, %s289, [#allocation6]
        $region24: #{tpu_custom_call.1} parent=11 // pred_fallthru
          _
        // Predicated region
        $region25: #{tpu_custom_call.1} parent=11 // pred_check
          %p292 = pneg %p165
        $region26: #{tpu_custom_call.1} parent=11 // pred_check_branch
          %294 = sbr.rel (%p292) target = $region28
        $region27: #{tpu_custom_call.1} parent=11 // pred_region
          %296 = vsyncadd [#allocation9], 0
          %s298 = sshll.u32 %s5, 4
          %s299 = int_to_ptr.hbm [resolvable:$true] %s298
          %s300 = sshll.u32 [#allocation8], 4
          %s301 = int_to_ptr.vmem [resolvable:$true] %s300
          %303 = dma.hbm_to_vmem [thread:$0]  %s299, 128, %s301, [#allocation9]
        $region28: #{tpu_custom_call.1} parent=11 // pred_fallthru
          _
        // Predicated region
        $region29: #{tpu_custom_call.1} parent=11 // pred_check
          %p304 = pneg %p186
        $region30: #{tpu_custom_call.1} parent=11 // pred_check_branch
          %306 = sbr.rel (%p304) target = $region32
        $region31: #{tpu_custom_call.1} parent=11 // pred_region
          %308 = vsyncadd [#allocation9], 0
          %s310 = sshll.u32 %s6, 4
          %s311 = int_to_ptr.hbm [resolvable:$true] %s310
          %s312 = sshll.u32 [#allocation10], 4
          %s313 = int_to_ptr.vmem [resolvable:$true] %s312
          %315 = dma.hbm_to_vmem [thread:$0]  %s311, 128, %s313, [#allocation9]
        $region32: #{tpu_custom_call.1} parent=11 // pred_fallthru
          _
        // Predicated region
        $region33: #{tpu_custom_call.1} parent=11 // pred_check
          %p316 = pneg %p207
        $region34: #{tpu_custom_call.1} parent=11 // pred_check_branch
          %318 = sbr.rel (%p316) target = $region36
        $region35: #{tpu_custom_call.1} parent=11 // pred_region
          _
        $region36: #{tpu_custom_call.1} parent=11 // pred_fallthru
          _
      $region12: #{tpu_custom_call.1} parent=5 // pred_fallthru
        _
      %p319 = scmp.lt.s32.totalorder %s29, 2
      // Predicated region
      $region37: #{tpu_custom_call.1} parent=5 // pred_check
        %p320 = pneg %p319
      $region38: #{tpu_custom_call.1} parent=5 // pred_check_branch
        %322 = sbr.rel (%p320) target = $region40
      $region39: #{tpu_custom_call.1} parent=5 // pred_region
        // Predicated region
        $region41: #{tpu_custom_call.1} parent=39 // pred_check
          %p323 = pneg %p49
        $region42: #{tpu_custom_call.1} parent=39 // pred_check_branch
          %325 = sbr.rel (%p323) target = $region44
        $region43: #{tpu_custom_call.1} parent=39 // pred_region
          %s326 = sand.u32 %s39, 1
          %s327 = scalar_lea.sflag [#allocation3], %s326
          %s328 = sand.u32 %s39, 1
          %s329 = scalar_lea.vmem [#allocation2], %s328
          %331 = vsyncadd %s327, 0
          %s332 = scalar_lea.hbm %s0, %s29
          %s334 = sshll.u32 %s332, 4
          %s335 = int_to_ptr.hbm [resolvable:$true] %s334
          %s336 = sshll.u32 %s329, 4
          %s337 = int_to_ptr.vmem [resolvable:$true] %s336
          %339 = dma.hbm_to_vmem [thread:$0]  %s335, 16, %s337, %s327
        $region44: #{tpu_custom_call.1} parent=39 // pred_fallthru
          _
        // Predicated region
        $region45: #{tpu_custom_call.1} parent=39 // pred_check
          %p340 = pneg %p75
        $region46: #{tpu_custom_call.1} parent=39 // pred_check_branch
          %342 = sbr.rel (%p340) target = $region48
        $region47: #{tpu_custom_call.1} parent=39 // pred_region
          %s343 = sand.u32 %s29, 1
          %s344 = scalar_lea.sflag [#allocation6], %s343
          %s345 = sand.u32 %s65, 1
          %s346 = smul.addr %s345, 88
          %s347 = scalar_lea.vmem [#allocation5], %s346
          %349 = vsyncadd %s344, 0
          %s350 = smul.addr %s29, 8
          %s351 = scalar_lea.hbm %s1, %s350
          %s352 = sshll.u32 %s351, 4
          %s353 = int_to_ptr.hbm [resolvable:$true] %s352
          %s354 = sshll.u32 %s347, 4
          %s355 = int_to_ptr.vmem [resolvable:$true] %s354
          %360 = dma.hbm_to_vmem [thread:$0]  %s353, 1408, %s355, %s344, 256, 128, 8
        $region48: #{tpu_custom_call.1} parent=39 // pred_fallthru
          _
      $region40: #{tpu_custom_call.1} parent=5 // pred_fallthru
        _
      %p361 = scmp.le.s32.totalorder 1, %s29
      %p362 = scmp.lt.s32.totalorder %s29, 3
      %p363 = pnand %p361, %p362
      %p364 = pneg %p363
      // Predicated region
      $region49: #{tpu_custom_call.1} parent=5 // pred_check
        _
      $region50: #{tpu_custom_call.1} parent=5 // pred_check_branch
        %366 = sbr.rel (%p363) target = $region52
      $region51: #{tpu_custom_call.1} parent=5 // pred_region
        %s367 = ssub.s32 %s29, 1
        %s368 = sand.u32 %s42, 1
        %s369 = scalar_lea.sflag [#allocation3], %s368
        %s370 = sand.u32 %s42, 1
        %s371 = scalar_lea.vmem [#allocation2], %s370
        // Predicated region
        $region53: #{tpu_custom_call.1} parent=51 // pred_check
          %p372 = pneg %p55
        $region54: #{tpu_custom_call.1} parent=51 // pred_check_branch
          %374 = sbr.rel (%p372) target = $region56
        $region55: #{tpu_custom_call.1} parent=51 // pred_region
          %376 = dma.done %s369, 16
        $region56: #{tpu_custom_call.1} parent=51 // pred_fallthru
          _
        %s377 = sand.u32 %s34, 1
        %s378 = scalar_lea.sflag [#allocation6], %s377
        %s379 = sand.u32 %s68, 1
        %s380 = smul.addr %s379, 88
        %s381 = scalar_lea.vmem [#allocation5], %s380
        // Predicated region
        $region57: #{tpu_custom_call.1} parent=51 // pred_check
          %p382 = pneg %p81
        $region58: #{tpu_custom_call.1} parent=51 // pred_check_branch
          %384 = sbr.rel (%p382) target = $region60
        $region59: #{tpu_custom_call.1} parent=51 // pred_region
          %386 = dma.done %s378, 1408
        $region60: #{tpu_custom_call.1} parent=51 // pred_fallthru
          _
        // Predicated region
        $region61: #{tpu_custom_call.1} parent=51 // pred_check
          %p387 = pneg %p144
        $region62: #{tpu_custom_call.1} parent=51 // pred_check_branch
          %389 = sbr.rel (%p387) target = $region64
        $region63: #{tpu_custom_call.1} parent=51 // pred_region
          %391 = dma.done [#allocation6], 128
        $region64: #{tpu_custom_call.1} parent=51 // pred_fallthru
          _
        // Predicated region
        $region65: #{tpu_custom_call.1} parent=51 // pred_check
          %p392 = pneg %p165
        $region66: #{tpu_custom_call.1} parent=51 // pred_check_branch
          %394 = sbr.rel (%p392) target = $region68
        $region67: #{tpu_custom_call.1} parent=51 // pred_region
          %396 = dma.done [#allocation9], 128
        $region68: #{tpu_custom_call.1} parent=51 // pred_fallthru
          _
        // Predicated region
        $region69: #{tpu_custom_call.1} parent=51 // pred_check
          %p397 = pneg %p186
        $region70: #{tpu_custom_call.1} parent=51 // pred_check_branch
          %399 = sbr.rel (%p397) target = $region72
        $region71: #{tpu_custom_call.1} parent=51 // pred_region
          %401 = dma.done [#allocation9], 128
        $region72: #{tpu_custom_call.1} parent=51 // pred_fallthru
          _
        %s402 = sand.u32 %s42, 1
        %s403 = scalar_lea.sflag [#allocation3], %s402
        %s404 = sand.u32 %s42, 1
        %s405 = scalar_lea.vmem [#allocation2], %s404
        %p406 = pneg %p55
        %p407 = pneg %p52
        %s408 = sand.u32 %s34, 1
        %s409 = scalar_lea.sflag [#allocation6], %s408
        %s410 = sand.u32 %s68, 1
        %s411 = smul.addr %s410, 88
        %s412 = scalar_lea.vmem [#allocation5], %s411
        %p413 = pneg %p81
        %p414 = pneg %p78
        %p415 = pneg %p102
        %p416 = pneg %p99
        %p417 = pneg %p123
        %p418 = pneg %p120
        %p419 = pneg %p144
        %p420 = pneg %p141
        %p421 = pneg %p165
        %p422 = pneg %p162
        %p423 = pneg %p186
        %p424 = pneg %p183
        %p425 = pneg %p207
        %p426 = pneg %p204
        %p427 = pneg %p233
        %p428 = pneg %p230
        %s429 = sand.u32 %s220, 1
        %s430 = scalar_lea.sflag [#allocation4], %s429
        %s431 = sand.u32 %s220, 1
        %s432 = scalar_lea.vmem [#allocation11], %s431
        %p433 = pneg %p259
        %p434 = pneg %p256
        %s435 = sand.u32 %s246, 1
        %s436 = scalar_lea.sflag [#allocation13], %s435
        %s437 = sand.u32 %s246, 1
        %s438 = scalar_lea.vmem [#allocation12], %s437
        %v439 = vld [vmem:[%s3] sm:$0xff]
        %v440 = vld [vmem:[#allocation7] sm:$0xff]
        %v441 = vld [vmem:[#allocation8] sm:$0xff]
        %v442 = vld [vmem:[#allocation10] sm:$0xff]
        %v443 = vld [vmem:[%s7] sm:$0x1]
        %v444 = vld [vmem:[%s371] sm:$0x1]
        %v445 = vld [vmem:[%s381] sm:$0xff]
        %v446 = vld [vmem:[%s381 + $0x8] sm:$0xff]
        %v447 = vld [vmem:[%s381 + $0x10] sm:$0xff]
        %v448 = vadd.f32 %v445, 0.54132324
        %v449 = vmax.f32 %v448, 0.0
        %v450 = vand.u32 2147483647, %v448
        %v451 = vsub.f32 0.0, %v450
        %v452 = vmul.f32 %v451, 1.442695
        %v453 = vpow.pop %v452
        %v454 = vadd.f32 %v453, 1.0
        %v455 = vlog2.pop %v454
        %v456 = vmul.f32 %v455, 0.6931472
        %v457 = vadd.f32 %v449, %v456
        %v459 = vperm.slane %v444, 0
        %v461 = vmul.f32 %v457, %v459
        %v462 = vadd.f32 %v461, %v446
        %v463 = vand.u32 2147483647, %v462
        %v464 = vsub.f32 0.0, %v463
        %v465 = vmul.f32 %v464, 1.442695
        %v466 = vpow.pop %v465
        %vm467 = vcmp.ge.f32.partialorder %v462, 0.0
        %v468 = vsel %vm467, 1.0, %v466
        %v469 = vadd.f32 %v466, 1.0
        %v470 = vrcp.pop %v469
        %v471 = vmul.f32 %v469, %v470
        %v472 = vsub.f32 1.0, %v471
        %v473 = vmul.f32 %v470, %v472
        %v474 = vadd.f32 %v470, %v473
        %vm475 = vweird.f32 %v469
        %vm476 = vweird.f32 %v470
        %vm477 = vmor %vm475, %vm476
        %v478 = vsel %vm477, %v470, %v474
        %v479 = vand.u32 2147483647, %v469
        %vm480 = vcmp.eq.f32.partialorder %v479, 8.507059e+37
        %v481 = vand.u32 %v469, 2147483648
        %v482 = vor.u32 1.1754944e-38, %v481
        %v483 = vsel %vm480, %v482, %v478
        %v484 = vmul.f32 %v468, %v483
        %v485 = vrot.slane %v447, 4
        %v486 = vmax.f32 %v447, %v485
        %v487 = vrot.slane %v486, 2
        %v488 = vmax.f32 %v486, %v487
        %v489 = vrot.slane %v488, 1
        %v490 = vmax.f32 %v488, %v489
        %v491 = vsub.f32 %v447, %v490
        %v492 = vmul.f32 %v491, 1.442695
        %v493 = vpow.pop %v492
        %495 = vset.pattern.permute.xlu0 0
        %496 = vperm.xlu0 %495, %v439
        %v497 = vpop.permute.xlu0 %496
        %v499 = vperm.slane %v493, 0
        %v500 = vmul.f32 %v497, %v499
        %501 = vset.pattern.permute.xlu0 1
        %502 = vperm.xlu0 %501, %v439
        %v503 = vpop.permute.xlu0 %502
        %v505 = vperm.slane %v493, 1
        %v506 = vmul.f32 %v503, %v505
        %v507 = vadd.f32 %v500, %v506
        %508 = vset.pattern.permute.xlu0 2
        %509 = vperm.xlu0 %508, %v439
        %v510 = vpop.permute.xlu0 %509
        %v512 = vperm.slane %v493, 2
        %v513 = vmul.f32 %v510, %v512
        %v514 = vadd.f32 %v507, %v513
        %515 = vset.pattern.permute.xlu0 3
        %516 = vperm.xlu0 %515, %v439
        %v517 = vpop.permute.xlu0 %516
        %v519 = vperm.slane %v493, 3
        %v520 = vmul.f32 %v517, %v519
        %v521 = vadd.f32 %v514, %v520
        %522 = vset.pattern.permute.xlu0 4
        %523 = vperm.xlu0 %522, %v439
        %v524 = vpop.permute.xlu0 %523
        %v526 = vperm.slane %v493, 4
        %v527 = vmul.f32 %v524, %v526
        %v528 = vadd.f32 %v521, %v527
        %529 = vset.pattern.permute.xlu0 5
        %530 = vperm.xlu0 %529, %v439
        %v531 = vpop.permute.xlu0 %530
        %v533 = vperm.slane %v493, 5
        %v534 = vmul.f32 %v531, %v533
        %v535 = vadd.f32 %v528, %v534
        %536 = vset.pattern.permute.xlu0 6
        %537 = vperm.xlu0 %536, %v439
        %v538 = vpop.permute.xlu0 %537
        %v540 = vperm.slane %v493, 6
        %v541 = vmul.f32 %v538, %v540
        %v542 = vadd.f32 %v535, %v541
        %543 = vset.pattern.permute.xlu0 7
        %544 = vperm.xlu0 %543, %v439
        %v545 = vpop.permute.xlu0 %544
        %v547 = vperm.slane %v493, 7
        %v548 = vmul.f32 %v545, %v547
        %v549 = vadd.f32 %v542, %v548
        %v550 = vmul.f32 %v493, %v484
        %v551 = vperm.slane %v550, 0
        %v552 = vmul.f32 %v497, %v551
        %v553 = vperm.slane %v550, 1
        %v554 = vmul.f32 %v503, %v553
        %v555 = vadd.f32 %v552, %v554
        %v556 = vperm.slane %v550, 2
        %v557 = vmul.f32 %v510, %v556
        %v558 = vadd.f32 %v555, %v557
        %v559 = vperm.slane %v550, 3
        %v560 = vmul.f32 %v517, %v559
        %v561 = vadd.f32 %v558, %v560
        %v562 = vperm.slane %v550, 4
        %v563 = vmul.f32 %v524, %v562
        %v564 = vadd.f32 %v561, %v563
        %v565 = vperm.slane %v550, 5
        %v566 = vmul.f32 %v531, %v565
        %v567 = vadd.f32 %v564, %v566
        %v568 = vperm.slane %v550, 6
        %v569 = vmul.f32 %v538, %v568
        %v570 = vadd.f32 %v567, %v569
        %v571 = vperm.slane %v550, 7
        %v572 = vmul.f32 %v545, %v571
        %v573 = vadd.f32 %v570, %v572
        %v574 = vrcp.pop %v549
        %v575 = vmul.f32 %v549, %v574
        %v576 = vsub.f32 1.0, %v575
        %v577 = vmul.f32 %v574, %v576
        %v578 = vadd.f32 %v574, %v577
        %vm579 = vweird.f32 %v549
        %vm580 = vweird.f32 %v574
        %vm581 = vmor %vm579, %vm580
        %v582 = vsel %vm581, %v574, %v578
        %v583 = vand.u32 2147483647, %v549
        %vm584 = vcmp.eq.f32.partialorder %v583, 8.507059e+37
        %v585 = vand.u32 %v549, 2147483648
        %v586 = vor.u32 1.1754944e-38, %v585
        %v587 = vsel %vm584, %v586, %v582
        %v588 = vmul.f32 1.0, %v587
        %v589 = vmul.f32 %v573, %v588
        %v590 = vmul.f32 %v589, 0.999999
        %v591 = vadd.f32 %v590, 5e-07
        %v592 = vlog2.pop %v591
        %v593 = vmul.f32 %v592, 0.6931472
        %v594 = vsub.f32 1.0, %v591
        %v595 = vlog2.pop %v594
        %v596 = vmul.f32 %v595, 0.6931472
        %v597 = vsub.f32 %v593, %v596
        %v598 = vmul.f32 %v457, 0.999998
        %v599 = vmul.f32 %v493, %v598
        %v600 = vsub.f32 1.0, %v484
        %v601 = vmul.f32 %v484, %v600
        %v602 = vmul.f32 %v599, %v601
        %v603 = vperm.slane %v602, 0
        %v604 = vmul.f32 %v497, %v603
        %v605 = vperm.slane %v602, 1
        %v606 = vmul.f32 %v503, %v605
        %v607 = vadd.f32 %v604, %v606
        %v608 = vperm.slane %v602, 2
        %v609 = vmul.f32 %v510, %v608
        %v610 = vadd.f32 %v607, %v609
        %v611 = vperm.slane %v602, 3
        %v612 = vmul.f32 %v517, %v611
        %v613 = vadd.f32 %v610, %v612
        %v614 = vperm.slane %v602, 4
        %v615 = vmul.f32 %v524, %v614
        %v616 = vadd.f32 %v613, %v615
        %v617 = vperm.slane %v602, 5
        %v618 = vmul.f32 %v531, %v617
        %v619 = vadd.f32 %v616, %v618
        %v620 = vperm.slane %v602, 6
        %v621 = vmul.f32 %v538, %v620
        %v622 = vadd.f32 %v619, %v621
        %v623 = vperm.slane %v602, 7
        %v624 = vmul.f32 %v545, %v623
        %v625 = vadd.f32 %v622, %v624
        %v626 = vmul.f32 %v625, %v588
        %v627 = vlog2.pop %v626
        %v628 = vmul.f32 %v627, 0.6931472
        %v629 = vadd.f32 %v628, -1.0000005e-06
        %v630 = vadd.f32 %v593, %v596
        %v631 = vsub.f32 %v629, %v630
        %v632 = vld [vmem:[%s381 + $0x18] sm:$0xff]
        %v633 = vld [vmem:[%s381 + $0x20] sm:$0xff]
        %v634 = vld [vmem:[%s381 + $0x28] sm:$0xff]
        %v635 = vld [vmem:[%s381 + $0x30] sm:$0xff]
        %v636 = vadd.f32 %v632, 0.54132324
        %v637 = vmax.f32 %v636, 0.0
        %v638 = vand.u32 2147483647, %v636
        %v639 = vsub.f32 0.0, %v638
        %v640 = vmul.f32 %v639, 1.442695
        %v641 = vpow.pop %v640
        %v642 = vadd.f32 %v641, 1.0
        %v643 = vlog2.pop %v642
        %v644 = vmul.f32 %v643, 0.6931472
        %v645 = vadd.f32 %v637, %v644
        %v646 = vrot.slane %v635, 4
        %v647 = vmax.f32 %v635, %v646
        %v648 = vrot.slane %v647, 2
        %v649 = vmax.f32 %v647, %v648
        %v650 = vrot.slane %v649, 1
        %v651 = vmax.f32 %v649, %v650
        %v652 = vsub.f32 %v635, %v651
        %v653 = vmul.f32 %v652, 1.442695
        %v654 = vpow.pop %v653
        %656 = vset.pattern.permute.xlu0 0
        %657 = vperm.xlu0 %656, %v440
        %v658 = vpop.permute.xlu0 %657
        %v660 = vperm.slane %v654, 0
        %v661 = vmul.f32 %v658, %v660
        %662 = vset.pattern.permute.xlu0 1
        %663 = vperm.xlu0 %662, %v440
        %v664 = vpop.permute.xlu0 %663
        %v666 = vperm.slane %v654, 1
        %v667 = vmul.f32 %v664, %v666
        %v668 = vadd.f32 %v661, %v667
        %669 = vset.pattern.permute.xlu0 2
        %670 = vperm.xlu0 %669, %v440
        %v671 = vpop.permute.xlu0 %670
        %v673 = vperm.slane %v654, 2
        %v674 = vmul.f32 %v671, %v673
        %v675 = vadd.f32 %v668, %v674
        %676 = vset.pattern.permute.xlu0 3
        %677 = vperm.xlu0 %676, %v440
        %v678 = vpop.permute.xlu0 %677
        %v680 = vperm.slane %v654, 3
        %v681 = vmul.f32 %v678, %v680
        %v682 = vadd.f32 %v675, %v681
        %683 = vset.pattern.permute.xlu0 4
        %684 = vperm.xlu0 %683, %v440
        %v685 = vpop.permute.xlu0 %684
        %v687 = vperm.slane %v654, 4
        %v688 = vmul.f32 %v685, %v687
        %v689 = vadd.f32 %v682, %v688
        %690 = vset.pattern.permute.xlu0 5
        %691 = vperm.xlu0 %690, %v440
        %v692 = vpop.permute.xlu0 %691
        %v694 = vperm.slane %v654, 5
        %v695 = vmul.f32 %v692, %v694
        %v696 = vadd.f32 %v689, %v695
        %697 = vset.pattern.permute.xlu0 6
        %698 = vperm.xlu0 %697, %v440
        %v699 = vpop.permute.xlu0 %698
        %v701 = vperm.slane %v654, 6
        %v702 = vmul.f32 %v699, %v701
        %v703 = vadd.f32 %v696, %v702
        %704 = vset.pattern.permute.xlu0 7
        %705 = vperm.xlu0 %704, %v440
        %v706 = vpop.permute.xlu0 %705
        %v708 = vperm.slane %v654, 7
        %v709 = vmul.f32 %v706, %v708
        %v710 = vadd.f32 %v703, %v709
        %v711 = vmul.f32 %v654, %v597
        %v712 = vperm.slane %v711, 0
        %v713 = vmul.f32 %v658, %v712
        %v714 = vperm.slane %v711, 1
        %v715 = vmul.f32 %v664, %v714
        %v716 = vadd.f32 %v713, %v715
        %v717 = vperm.slane %v711, 2
        %v718 = vmul.f32 %v671, %v717
        %v719 = vadd.f32 %v716, %v718
        %v720 = vperm.slane %v711, 3
        %v721 = vmul.f32 %v678, %v720
        %v722 = vadd.f32 %v719, %v721
        %v723 = vperm.slane %v711, 4
        %v724 = vmul.f32 %v685, %v723
        %v725 = vadd.f32 %v722, %v724
        %v726 = vperm.slane %v711, 5
        %v727 = vmul.f32 %v692, %v726
        %v728 = vadd.f32 %v725, %v727
        %v729 = vperm.slane %v711, 6
        %v730 = vmul.f32 %v699, %v729
        %v731 = vadd.f32 %v728, %v730
        %v732 = vperm.slane %v711, 7
        %v733 = vmul.f32 %v706, %v732
        %v734 = vadd.f32 %v731, %v733
        %v735 = vrcp.pop %v710
        %v736 = vmul.f32 %v710, %v735
        %v737 = vsub.f32 1.0, %v736
        %v738 = vmul.f32 %v735, %v737
        %v739 = vadd.f32 %v735, %v738
        %vm740 = vweird.f32 %v710
        %vm741 = vweird.f32 %v735
        %vm742 = vmor %vm740, %vm741
        %v743 = vsel %vm742, %v735, %v739
        %v744 = vand.u32 2147483647, %v710
        %vm745 = vcmp.eq.f32.partialorder %v744, 8.507059e+37
        %v746 = vand.u32 %v710, 2147483648
        %v747 = vor.u32 1.1754944e-38, %v746
        %v748 = vsel %vm745, %v747, %v743
        %v749 = vmul.f32 1.0, %v748
        %v750 = vmul.f32 %v734, %v749
        %v751 = vmul.f32 %v645, %v750
        %v752 = vadd.f32 %v751, %v633
        %v753 = vand.u32 2147483647, %v752
        %v754 = vsub.f32 0.0, %v753
        %v755 = vmul.f32 %v754, 1.442695
        %v756 = vpow.pop %v755
        %vm757 = vcmp.ge.f32.partialorder %v752, 0.0
        %v758 = vsel %vm757, 1.0, %v756
        %v759 = vadd.f32 %v756, 1.0
        %v760 = vrcp.pop %v759
        %v761 = vmul.f32 %v759, %v760
        %v762 = vsub.f32 1.0, %v761
        %v763 = vmul.f32 %v760, %v762
        %v764 = vadd.f32 %v760, %v763
        %vm765 = vweird.f32 %v759
        %vm766 = vweird.f32 %v760
        %vm767 = vmor %vm765, %vm766
        %v768 = vsel %vm767, %v760, %v764
        %v769 = vand.u32 2147483647, %v759
        %vm770 = vcmp.eq.f32.partialorder %v769, 8.507059e+37
        %v771 = vand.u32 %v759, 2147483648
        %v772 = vor.u32 1.1754944e-38, %v771
        %v773 = vsel %vm770, %v772, %v768
        %v774 = vmul.f32 %v758, %v773
        %v775 = vrot.slane %v634, 4
        %v776 = vmax.f32 %v634, %v775
        %v777 = vrot.slane %v776, 2
        %v778 = vmax.f32 %v776, %v777
        %v779 = vrot.slane %v778, 1
        %v780 = vmax.f32 %v778, %v779
        %v781 = vsub.f32 %v634, %v780
        %v782 = vmul.f32 %v781, 1.442695
        %v783 = vpow.pop %v782
        %785 = vset.pattern.permute.xlu0 0
        %786 = vperm.xlu0 %785, %v441
        %v787 = vpop.permute.xlu0 %786
        %v789 = vperm.slane %v783, 0
        %v790 = vmul.f32 %v787, %v789
        %791 = vset.pattern.permute.xlu0 1
        %792 = vperm.xlu0 %791, %v441
        %v793 = vpop.permute.xlu0 %792
        %v795 = vperm.slane %v783, 1
        %v796 = vmul.f32 %v793, %v795
        %v797 = vadd.f32 %v790, %v796
        %798 = vset.pattern.permute.xlu0 2
        %799 = vperm.xlu0 %798, %v441
        %v800 = vpop.permute.xlu0 %799
        %v802 = vperm.slane %v783, 2
        %v803 = vmul.f32 %v800, %v802
        %v804 = vadd.f32 %v797, %v803
        %805 = vset.pattern.permute.xlu0 3
        %806 = vperm.xlu0 %805, %v441
        %v807 = vpop.permute.xlu0 %806
        %v809 = vperm.slane %v783, 3
        %v810 = vmul.f32 %v807, %v809
        %v811 = vadd.f32 %v804, %v810
        %812 = vset.pattern.permute.xlu0 4
        %813 = vperm.xlu0 %812, %v441
        %v814 = vpop.permute.xlu0 %813
        %v816 = vperm.slane %v783, 4
        %v817 = vmul.f32 %v814, %v816
        %v818 = vadd.f32 %v811, %v817
        %819 = vset.pattern.permute.xlu0 5
        %820 = vperm.xlu0 %819, %v441
        %v821 = vpop.permute.xlu0 %820
        %v823 = vperm.slane %v783, 5
        %v824 = vmul.f32 %v821, %v823
        %v825 = vadd.f32 %v818, %v824
        %826 = vset.pattern.permute.xlu0 6
        %827 = vperm.xlu0 %826, %v441
        %v828 = vpop.permute.xlu0 %827
        %v830 = vperm.slane %v783, 6
        %v831 = vmul.f32 %v828, %v830
        %v832 = vadd.f32 %v825, %v831
        %833 = vset.pattern.permute.xlu0 7
        %834 = vperm.xlu0 %833, %v441
        %v835 = vpop.permute.xlu0 %834
        %v837 = vperm.slane %v783, 7
        %v838 = vmul.f32 %v835, %v837
        %v839 = vadd.f32 %v832, %v838
        %v840 = vmul.f32 %v783, %v774
        %v841 = vperm.slane %v840, 0
        %v842 = vmul.f32 %v787, %v841
        %v843 = vperm.slane %v840, 1
        %v844 = vmul.f32 %v793, %v843
        %v845 = vadd.f32 %v842, %v844
        %v846 = vperm.slane %v840, 2
        %v847 = vmul.f32 %v800, %v846
        %v848 = vadd.f32 %v845, %v847
        %v849 = vperm.slane %v840, 3
        %v850 = vmul.f32 %v807, %v849
        %v851 = vadd.f32 %v848, %v850
        %v852 = vperm.slane %v840, 4
        %v853 = vmul.f32 %v814, %v852
        %v854 = vadd.f32 %v851, %v853
        %v855 = vperm.slane %v840, 5
        %v856 = vmul.f32 %v821, %v855
        %v857 = vadd.f32 %v854, %v856
        %v858 = vperm.slane %v840, 6
        %v859 = vmul.f32 %v828, %v858
        %v860 = vadd.f32 %v857, %v859
        %v861 = vperm.slane %v840, 7
        %v862 = vmul.f32 %v835, %v861
        %v863 = vadd.f32 %v860, %v862
        %v864 = vrcp.pop %v839
        %v865 = vmul.f32 %v839, %v864
        %v866 = vsub.f32 1.0, %v865
        %v867 = vmul.f32 %v864, %v866
        %v868 = vadd.f32 %v864, %v867
        %vm869 = vweird.f32 %v839
        %vm870 = vweird.f32 %v864
        %vm871 = vmor %vm869, %vm870
        %v872 = vsel %vm871, %v864, %v868
        %v873 = vand.u32 2147483647, %v839
        %vm874 = vcmp.eq.f32.partialorder %v873, 8.507059e+37
        %v875 = vand.u32 %v839, 2147483648
        %v876 = vor.u32 1.1754944e-38, %v875
        %v877 = vsel %vm874, %v876, %v872
        %v878 = vmul.f32 1.0, %v877
        %v879 = vmul.f32 %v863, %v878
        %v880 = vmul.f32 %v879, 0.999999
        %v881 = vadd.f32 %v880, 5e-07
        %v882 = vlog2.pop %v881
        %v883 = vmul.f32 %v882, 0.6931472
        %v884 = vsub.f32 1.0, %v881
        %v885 = vlog2.pop %v884
        %v886 = vmul.f32 %v885, 0.6931472
        %v887 = vsub.f32 %v883, %v886
        %v888 = vmul.f32 %v645, 0.999998
        %v889 = vmul.f32 %v783, %v888
        %v890 = vsub.f32 1.0, %v774
        %v891 = vmul.f32 %v774, %v890
        %v892 = vmul.f32 %v889, %v891
        %v893 = vadd.f32 %v635, %v631
        %v894 = vrot.slane %v893, 4
        %v895 = vmax.f32 %v893, %v894
        %v896 = vrot.slane %v895, 2
        %v897 = vmax.f32 %v895, %v896
        %v898 = vrot.slane %v897, 1
        %v899 = vmax.f32 %v897, %v898
        %v900 = vsub.f32 %v893, %v899
        %v901 = vmul.f32 %v900, 1.442695
        %v902 = vpow.pop %v901
        %v903 = vperm.slane %v902, 0
        %v904 = vmul.f32 %v658, %v903
        %v905 = vperm.slane %v902, 1
        %v906 = vmul.f32 %v664, %v905
        %v907 = vadd.f32 %v904, %v906
        %v908 = vperm.slane %v902, 2
        %v909 = vmul.f32 %v671, %v908
        %v910 = vadd.f32 %v907, %v909
        %v911 = vperm.slane %v902, 3
        %v912 = vmul.f32 %v678, %v911
        %v913 = vadd.f32 %v910, %v912
        %v914 = vperm.slane %v902, 4
        %v915 = vmul.f32 %v685, %v914
        %v916 = vadd.f32 %v913, %v915
        %v917 = vperm.slane %v902, 5
        %v918 = vmul.f32 %v692, %v917
        %v919 = vadd.f32 %v916, %v918
        %v920 = vperm.slane %v902, 6
        %v921 = vmul.f32 %v699, %v920
        %v922 = vadd.f32 %v919, %v921
        %v923 = vperm.slane %v902, 7
        %v924 = vmul.f32 %v706, %v923
        %v925 = vadd.f32 %v922, %v924
        %v926 = vmul.f32 %v892, %v749
        %v927 = vmul.f32 %v926, %v925
        %v928 = vperm.slane %v927, 0
        %v929 = vmul.f32 %v787, %v928
        %v930 = vperm.slane %v927, 1
        %v931 = vmul.f32 %v793, %v930
        %v932 = vadd.f32 %v929, %v931
        %v933 = vperm.slane %v927, 2
        %v934 = vmul.f32 %v800, %v933
        %v935 = vadd.f32 %v932, %v934
        %v936 = vperm.slane %v927, 3
        %v937 = vmul.f32 %v807, %v936
        %v938 = vadd.f32 %v935, %v937
        %v939 = vperm.slane %v927, 4
        %v940 = vmul.f32 %v814, %v939
        %v941 = vadd.f32 %v938, %v940
        %v942 = vperm.slane %v927, 5
        %v943 = vmul.f32 %v821, %v942
        %v944 = vadd.f32 %v941, %v943
        %v945 = vperm.slane %v927, 6
        %v946 = vmul.f32 %v828, %v945
        %v947 = vadd.f32 %v944, %v946
        %v948 = vperm.slane %v927, 7
        %v949 = vmul.f32 %v835, %v948
        %v950 = vadd.f32 %v947, %v949
        %v951 = vmul.f32 %v950, %v878
        %v952 = vlog2.pop %v951
        %v953 = vmul.f32 %v952, 0.6931472
        %v954 = vsub.f32 %v899, %v651
        %v955 = vadd.f32 %v953, %v954
        %v956 = vadd.f32 %v955, -1.0000005e-06
        %v957 = vadd.f32 %v883, %v886
        %v958 = vsub.f32 %v956, %v957
        %v959 = vld [vmem:[%s381 + $0x38] sm:$0xff]
        %v960 = vld [vmem:[%s381 + $0x40] sm:$0xff]
        %v961 = vld [vmem:[%s381 + $0x48] sm:$0xff]
        %v962 = vld [vmem:[%s381 + $0x50] sm:$0xff]
        %v963 = vadd.f32 %v959, 0.54132324
        %v964 = vmax.f32 %v963, 0.0
        %v965 = vand.u32 2147483647, %v963
        %v966 = vsub.f32 0.0, %v965
        %v967 = vmul.f32 %v966, 1.442695
        %v968 = vpow.pop %v967
        %v969 = vadd.f32 %v968, 1.0
        %v970 = vlog2.pop %v969
        %v971 = vmul.f32 %v970, 0.6931472
        %v972 = vadd.f32 %v964, %v971
        %v973 = vrot.slane %v962, 4
        %v974 = vmax.f32 %v962, %v973
        %v975 = vrot.slane %v974, 2
        %v976 = vmax.f32 %v974, %v975
        %v977 = vrot.slane %v976, 1
        %v978 = vmax.f32 %v976, %v977
        %v979 = vsub.f32 %v962, %v978
        %v980 = vmul.f32 %v979, 1.442695
        %v981 = vpow.pop %v980
        %983 = vset.pattern.permute.xlu0 0
        %984 = vperm.xlu0 %983, %v442
        %v985 = vpop.permute.xlu0 %984
        %v987 = vperm.slane %v981, 0
        %v988 = vmul.f32 %v985, %v987
        %989 = vset.pattern.permute.xlu0 1
        %990 = vperm.xlu0 %989, %v442
        %v991 = vpop.permute.xlu0 %990
        %v993 = vperm.slane %v981, 1
        %v994 = vmul.f32 %v991, %v993
        %v995 = vadd.f32 %v988, %v994
        %996 = vset.pattern.permute.xlu0 2
        %997 = vperm.xlu0 %996, %v442
        %v998 = vpop.permute.xlu0 %997
        %v1000 = vperm.slane %v981, 2
        %v1001 = vmul.f32 %v998, %v1000
        %v1002 = vadd.f32 %v995, %v1001
        %1003 = vset.pattern.permute.xlu0 3
        %1004 = vperm.xlu0 %1003, %v442
        %v1005 = vpop.permute.xlu0 %1004
        %v1007 = vperm.slane %v981, 3
        %v1008 = vmul.f32 %v1005, %v1007
        %v1009 = vadd.f32 %v1002, %v1008
        %1010 = vset.pattern.permute.xlu0 4
        %1011 = vperm.xlu0 %1010, %v442
        %v1012 = vpop.permute.xlu0 %1011
        %v1014 = vperm.slane %v981, 4
        %v1015 = vmul.f32 %v1012, %v1014
        %v1016 = vadd.f32 %v1009, %v1015
        %1017 = vset.pattern.permute.xlu0 5
        %1018 = vperm.xlu0 %1017, %v442
        %v1019 = vpop.permute.xlu0 %1018
        %v1021 = vperm.slane %v981, 5
        %v1022 = vmul.f32 %v1019, %v1021
        %v1023 = vadd.f32 %v1016, %v1022
        %1024 = vset.pattern.permute.xlu0 6
        %1025 = vperm.xlu0 %1024, %v442
        %v1026 = vpop.permute.xlu0 %1025
        %v1028 = vperm.slane %v981, 6
        %v1029 = vmul.f32 %v1026, %v1028
        %v1030 = vadd.f32 %v1023, %v1029
        %1031 = vset.pattern.permute.xlu0 7
        %1032 = vperm.xlu0 %1031, %v442
        %v1033 = vpop.permute.xlu0 %1032
        %v1035 = vperm.slane %v981, 7
        %v1036 = vmul.f32 %v1033, %v1035
        %v1037 = vadd.f32 %v1030, %v1036
        %v1038 = vmul.f32 %v981, %v887
        %v1039 = vperm.slane %v1038, 0
        %v1040 = vmul.f32 %v985, %v1039
        %v1041 = vperm.slane %v1038, 1
        %v1042 = vmul.f32 %v991, %v1041
        %v1043 = vadd.f32 %v1040, %v1042
        %v1044 = vperm.slane %v1038, 2
        %v1045 = vmul.f32 %v998, %v1044
        %v1046 = vadd.f32 %v1043, %v1045
        %v1047 = vperm.slane %v1038, 3
        %v1048 = vmul.f32 %v1005, %v1047
        %v1049 = vadd.f32 %v1046, %v1048
        %v1050 = vperm.slane %v1038, 4
        %v1051 = vmul.f32 %v1012, %v1050
        %v1052 = vadd.f32 %v1049, %v1051
        %v1053 = vperm.slane %v1038, 5
        %v1054 = vmul.f32 %v1019, %v1053
        %v1055 = vadd.f32 %v1052, %v1054
        %v1056 = vperm.slane %v1038, 6
        %v1057 = vmul.f32 %v1026, %v1056
        %v1058 = vadd.f32 %v1055, %v1057
        %v1059 = vperm.slane %v1038, 7
        %v1060 = vmul.f32 %v1033, %v1059
        %v1061 = vadd.f32 %v1058, %v1060
        %v1062 = vrcp.pop %v1037
        %v1063 = vmul.f32 %v1037, %v1062
        %v1064 = vsub.f32 1.0, %v1063
        %v1065 = vmul.f32 %v1062, %v1064
        %v1066 = vadd.f32 %v1062, %v1065
        %vm1067 = vweird.f32 %v1037
        %vm1068 = vweird.f32 %v1062
        %vm1069 = vmor %vm1067, %vm1068
        %v1070 = vsel %vm1069, %v1062, %v1066
        %v1071 = vand.u32 2147483647, %v1037
        %vm1072 = vcmp.eq.f32.partialorder %v1071, 8.507059e+37
        %v1073 = vand.u32 %v1037, 2147483648
        %v1074 = vor.u32 1.1754944e-38, %v1073
        %v1075 = vsel %vm1072, %v1074, %v1070
        %v1076 = vmul.f32 1.0, %v1075
        %v1077 = vmul.f32 %v1061, %v1076
        %v1078 = vmul.f32 %v972, %v1077
        %v1079 = vadd.f32 %v1078, %v960
        %v1080 = vand.u32 2147483647, %v1079
        %v1081 = vsub.f32 0.0, %v1080
        %v1082 = vmul.f32 %v1081, 1.442695
        %v1083 = vpow.pop %v1082
        %vm1084 = vcmp.ge.f32.partialorder %v1079, 0.0
        %v1085 = vsel %vm1084, 1.0, %v1083
        %v1086 = vadd.f32 %v1083, 1.0
        %v1087 = vrcp.pop %v1086
        %v1088 = vmul.f32 %v1086, %v1087
        %v1089 = vsub.f32 1.0, %v1088
        %v1090 = vmul.f32 %v1087, %v1089
        %v1091 = vadd.f32 %v1087, %v1090
        %vm1092 = vweird.f32 %v1086
        %vm1093 = vweird.f32 %v1087
        %vm1094 = vmor %vm1092, %vm1093
        %v1095 = vsel %vm1094, %v1087, %v1091
        %v1096 = vand.u32 2147483647, %v1086
        %vm1097 = vcmp.eq.f32.partialorder %v1096, 8.507059e+37
        %v1098 = vand.u32 %v1086, 2147483648
        %v1099 = vor.u32 1.1754944e-38, %v1098
        %v1100 = vsel %vm1097, %v1099, %v1095
        %v1101 = vmul.f32 %v1085, %v1100
        %v1102 = vrot.slane %v961, 4
        %v1103 = vmax.f32 %v961, %v1102
        %v1104 = vrot.slane %v1103, 2
        %v1105 = vmax.f32 %v1103, %v1104
        %v1106 = vrot.slane %v1105, 1
        %v1107 = vmax.f32 %v1105, %v1106
        %v1108 = vsub.f32 %v961, %v1107
        %v1109 = vmul.f32 %v1108, 1.442695
        %v1110 = vpow.pop %v1109
        %1112 = vset.pattern.permute.xlu0 0
        %1113 = vperm.xlu0 %1112, %v443
        %v1114 = vpop.permute.xlu0 %1113
        %v1116 = vperm.slane %v1114, 0
        %v1117 = vmul.f32 %v1116, %v1110
        %1118 = vset.pattern.permute.xlu0 1
        %1119 = vperm.xlu0 %1118, %v443
        %v1120 = vpop.permute.xlu0 %1119
        %v1122 = vperm.slane %v1120, 0
        %v1123 = vmul.f32 %v1122, %v1110
        %v1125 = vrot.slane %v1123, 1
        %v1127 = vadd.f32 %v1117, %v1125
        %1128 = vset.pattern.permute.xlu0 2
        %1129 = vperm.xlu0 %1128, %v443
        %v1130 = vpop.permute.xlu0 %1129
        %v1132 = vperm.slane %v1130, 0
        %v1133 = vmul.f32 %v1132, %v1110
        %v1135 = vrot.slane %v1133, 2
        %v1137 = vadd.f32 %v1127, %v1135
        %1138 = vset.pattern.permute.xlu0 3
        %1139 = vperm.xlu0 %1138, %v443
        %v1140 = vpop.permute.xlu0 %1139
        %v1142 = vperm.slane %v1140, 0
        %v1143 = vmul.f32 %v1142, %v1110
        %v1145 = vrot.slane %v1143, 3
        %v1147 = vadd.f32 %v1137, %v1145
        %1148 = vset.pattern.permute.xlu0 4
        %1149 = vperm.xlu0 %1148, %v443
        %v1150 = vpop.permute.xlu0 %1149
        %v1152 = vperm.slane %v1150, 0
        %v1153 = vmul.f32 %v1152, %v1110
        %v1155 = vrot.slane %v1153, 4
        %v1157 = vadd.f32 %v1147, %v1155
        %1158 = vset.pattern.permute.xlu0 5
        %1159 = vperm.xlu0 %1158, %v443
        %v1160 = vpop.permute.xlu0 %1159
        %v1162 = vperm.slane %v1160, 0
        %v1163 = vmul.f32 %v1162, %v1110
        %v1165 = vrot.slane %v1163, 5
        %v1167 = vadd.f32 %v1157, %v1165
        %1168 = vset.pattern.permute.xlu0 6
        %1169 = vperm.xlu0 %1168, %v443
        %v1170 = vpop.permute.xlu0 %1169
        %v1172 = vperm.slane %v1170, 0
        %v1173 = vmul.f32 %v1172, %v1110
        %v1175 = vrot.slane %v1173, 6
        %v1177 = vadd.f32 %v1167, %v1175
        %1178 = vset.pattern.permute.xlu0 7
        %1179 = vperm.xlu0 %1178, %v443
        %v1180 = vpop.permute.xlu0 %1179
        %v1182 = vperm.slane %v1180, 0
        %v1183 = vmul.f32 %v1182, %v1110
        %v1185 = vrot.slane %v1183, 7
        %v1187 = vadd.f32 %v1177, %v1185
        %v1188 = vmul.f32 %v1110, %v1101
        %v1189 = vmul.f32 %v1116, %v1188
        %v1190 = vmul.f32 %v1122, %v1188
        %v1192 = vrot.slane %v1190, 1
        %v1194 = vadd.f32 %v1189, %v1192
        %v1195 = vmul.f32 %v1132, %v1188
        %v1197 = vrot.slane %v1195, 2
        %v1199 = vadd.f32 %v1194, %v1197
        %v1200 = vmul.f32 %v1142, %v1188
        %v1202 = vrot.slane %v1200, 3
        %v1204 = vadd.f32 %v1199, %v1202
        %v1205 = vmul.f32 %v1152, %v1188
        %v1207 = vrot.slane %v1205, 4
        %v1209 = vadd.f32 %v1204, %v1207
        %v1210 = vmul.f32 %v1162, %v1188
        %v1212 = vrot.slane %v1210, 5
        %v1214 = vadd.f32 %v1209, %v1212
        %v1215 = vmul.f32 %v1172, %v1188
        %v1217 = vrot.slane %v1215, 6
        %v1219 = vadd.f32 %v1214, %v1217
        %v1220 = vmul.f32 %v1182, %v1188
        %v1222 = vrot.slane %v1220, 7
        %v1224 = vadd.f32 %v1219, %v1222
        %v1225 = vrcp.pop %v1187
        %v1226 = vmul.f32 %v1187, %v1225
        %v1227 = vsub.f32 1.0, %v1226
        %v1228 = vmul.f32 %v1225, %v1227
        %v1229 = vadd.f32 %v1225, %v1228
        %vm1230 = vweird.f32 %v1187
        %vm1231 = vweird.f32 %v1225
        %vm1232 = vmor %vm1230, %vm1231
        %v1233 = vsel %vm1232, %v1225, %v1229
        %v1234 = vand.u32 2147483647, %v1187
        %vm1235 = vcmp.eq.f32.partialorder %v1234, 8.507059e+37
        %v1236 = vand.u32 %v1187, 2147483648
        %v1237 = vor.u32 1.1754944e-38, %v1236
        %v1238 = vsel %vm1235, %v1237, %v1233
        %v1239 = vmul.f32 1.0, %v1238
        %v1240 = vmul.f32 %v1224, %v1239
        %v1241 = vmul.f32 %v1240, 0.999999
        %v1242 = vadd.f32 %v1241, 5e-07
        %v1243 = vlog2.pop %v1242
        %v1244 = vmul.f32 %v1243, 0.6931472
        %v1245 = vsub.f32 1.0, %v1242
        %v1246 = vlog2.pop %v1245
        %v1247 = vmul.f32 %v1246, 0.6931472
        %v1248 = vsub.f32 %v1244, %v1247
        %v1249 = vmul.f32 %v972, 0.999998
        %v1250 = vmul.f32 %v1110, %v1249
        %v1251 = vsub.f32 1.0, %v1101
        %v1252 = vmul.f32 %v1101, %v1251
        %v1253 = vmul.f32 %v1250, %v1252
        %v1254 = vadd.f32 %v962, %v958
        %v1255 = vrot.slane %v1254, 4
        %v1256 = vmax.f32 %v1254, %v1255
        %v1257 = vrot.slane %v1256, 2
        %v1258 = vmax.f32 %v1256, %v1257
        %v1259 = vrot.slane %v1258, 1
        %v1260 = vmax.f32 %v1258, %v1259
        %v1261 = vsub.f32 %v1254, %v1260
        %v1262 = vmul.f32 %v1261, 1.442695
        %v1263 = vpow.pop %v1262
        %v1264 = vperm.slane %v1263, 0
        %v1265 = vmul.f32 %v985, %v1264
        %v1266 = vperm.slane %v1263, 1
        %v1267 = vmul.f32 %v991, %v1266
        %v1268 = vadd.f32 %v1265, %v1267
        %v1269 = vperm.slane %v1263, 2
        %v1270 = vmul.f32 %v998, %v1269
        %v1271 = vadd.f32 %v1268, %v1270
        %v1272 = vperm.slane %v1263, 3
        %v1273 = vmul.f32 %v1005, %v1272
        %v1274 = vadd.f32 %v1271, %v1273
        %v1275 = vperm.slane %v1263, 4
        %v1276 = vmul.f32 %v1012, %v1275
        %v1277 = vadd.f32 %v1274, %v1276
        %v1278 = vperm.slane %v1263, 5
        %v1279 = vmul.f32 %v1019, %v1278
        %v1280 = vadd.f32 %v1277, %v1279
        %v1281 = vperm.slane %v1263, 6
        %v1282 = vmul.f32 %v1026, %v1281
        %v1283 = vadd.f32 %v1280, %v1282
        %v1284 = vperm.slane %v1263, 7
        %v1285 = vmul.f32 %v1033, %v1284
        %v1286 = vadd.f32 %v1283, %v1285
        %v1287 = vmul.f32 %v1253, %v1076
        %v1288 = vmul.f32 %v1287, %v1286
        %v1289 = vmul.f32 %v1116, %v1288
        %v1290 = vmul.f32 %v1122, %v1288
        %v1292 = vrot.slane %v1290, 1
        %v1294 = vadd.f32 %v1289, %v1292
        %v1295 = vmul.f32 %v1132, %v1288
        %v1297 = vrot.slane %v1295, 2
        %v1299 = vadd.f32 %v1294, %v1297
        %v1300 = vmul.f32 %v1142, %v1288
        %v1302 = vrot.slane %v1300, 3
        %v1304 = vadd.f32 %v1299, %v1302
        %v1305 = vmul.f32 %v1152, %v1288
        %v1307 = vrot.slane %v1305, 4
        %v1309 = vadd.f32 %v1304, %v1307
        %v1310 = vmul.f32 %v1162, %v1288
        %v1312 = vrot.slane %v1310, 5
        %v1314 = vadd.f32 %v1309, %v1312
        %v1315 = vmul.f32 %v1172, %v1288
        %v1317 = vrot.slane %v1315, 6
        %v1319 = vadd.f32 %v1314, %v1317
        %v1320 = vmul.f32 %v1182, %v1288
        %v1322 = vrot.slane %v1320, 7
        %v1324 = vadd.f32 %v1319, %v1322
        %v1325 = vmul.f32 %v1324, %v1239
        %v1326 = vlog2.pop %v1325
        %v1327 = vmul.f32 %v1326, 0.6931472
        %v1328 = vsub.f32 %v1260, %v978
        %v1329 = vadd.f32 %v1327, %v1328
        %v1330 = vadd.f32 %v1329, -1.0000005e-06
        %v1331 = vadd.f32 %v1244, %v1247
        %v1332 = vsub.f32 %v1330, %v1331
        %1333 = vst [vmem:[%s432] sm:$0x1] %v1248
        %1334 = vst [vmem:[%s438] sm:$0x1] %v1332
        %s1335 = sand.u32 %s220, 1
        %s1336 = scalar_lea.sflag [#allocation4], %s1335
        %s1337 = sand.u32 %s220, 1
        %s1338 = scalar_lea.vmem [#allocation11], %s1337
        %s1339 = sand.u32 %s246, 1
        %s1340 = scalar_lea.sflag [#allocation13], %s1339
        %s1341 = sand.u32 %s246, 1
        %s1342 = scalar_lea.vmem [#allocation12], %s1341
        // Predicated region
        $region73: #{tpu_custom_call.1} parent=51 // pred_check
          %p1343 = pneg %p230
        $region74: #{tpu_custom_call.1} parent=51 // pred_check_branch
          %1345 = sbr.rel (%p1343) target = $region76
        $region75: #{tpu_custom_call.1} parent=51 // pred_region
          %1347 = vsyncadd %s1336, 0
          %s1348 = scalar_lea.hbm %s8, %s34
          %s1350 = sshll.u32 %s1338, 4
          %s1351 = int_to_ptr.vmem [resolvable:$true] %s1350
          %s1352 = sshll.u32 %s1348, 4
          %s1353 = int_to_ptr.hbm [resolvable:$true] %s1352
          %1355 = dma.vmem_to_hbm [thread:$0]  %s1351, 16, %s1353, %s1336
        $region76: #{tpu_custom_call.1} parent=51 // pred_fallthru
          _
        // Predicated region
        $region77: #{tpu_custom_call.1} parent=51 // pred_check
          %p1356 = pneg %p256
        $region78: #{tpu_custom_call.1} parent=51 // pred_check_branch
          %1358 = sbr.rel (%p1356) target = $region80
        $region79: #{tpu_custom_call.1} parent=51 // pred_region
          %1360 = vsyncadd %s1340, 0
          %s1361 = scalar_lea.hbm %s9, %s34
          %s1363 = sshll.u32 %s1342, 4
          %s1364 = int_to_ptr.vmem [resolvable:$true] %s1363
          %s1365 = sshll.u32 %s1361, 4
          %s1366 = int_to_ptr.hbm [resolvable:$true] %s1365
          %1368 = dma.vmem_to_hbm [thread:$0]  %s1364, 16, %s1366, %s1340
        $region80: #{tpu_custom_call.1} parent=51 // pred_fallthru
          _
      $region52: #{tpu_custom_call.1} parent=5 // pred_fallthru
        _
      %p1369 = scmp.le.s32.totalorder 2, %s29
      // Predicated region
      $region81: #{tpu_custom_call.1} parent=5 // pred_check
        %p1370 = pneg %p1369
      $region82: #{tpu_custom_call.1} parent=5 // pred_check_branch
        %1372 = sbr.rel (%p1370) target = $region84
      $region83: #{tpu_custom_call.1} parent=5 // pred_region
        %s1373 = ssub.s32 %s29, 2
        // Predicated region
        $region85: #{tpu_custom_call.1} parent=83 // pred_check
          %p1374 = pneg %p236
        $region86: #{tpu_custom_call.1} parent=83 // pred_check_branch
          %1376 = sbr.rel (%p1374) target = $region88
        $region87: #{tpu_custom_call.1} parent=83 // pred_region
          %s1377 = sand.u32 %s221, 1
          %s1378 = scalar_lea.sflag [#allocation4], %s1377
          %s1379 = sand.u32 %s221, 1
          %s1380 = scalar_lea.vmem [#allocation11], %s1379
          %1382 = dma.done %s1378, 16
        $region88: #{tpu_custom_call.1} parent=83 // pred_fallthru
          _
        // Predicated region
        $region89: #{tpu_custom_call.1} parent=83 // pred_check
          %p1383 = pneg %p262
        $region90: #{tpu_custom_call.1} parent=83 // pred_check_branch
          %1385 = sbr.rel (%p1383) target = $region92
        $region91: #{tpu_custom_call.1} parent=83 // pred_region
          %s1386 = sand.u32 %s247, 1
          %s1387 = scalar_lea.sflag [#allocation13], %s1386
          %s1388 = sand.u32 %s247, 1
          %s1389 = scalar_lea.vmem [#allocation12], %s1388
          %1391 = dma.done %s1387, 16
        $region92: #{tpu_custom_call.1} parent=83 // pred_fallthru
          _
      $region84: #{tpu_custom_call.1} parent=5 // pred_fallthru
        _
    $region6: #{tpu_custom_call.1} parent=1 // loop_footer
      %s33 = sadd.s32 1, %s29
    $region7: #{tpu_custom_call.1} parent=1 // loop_footer_branch
      %28 = sbr.rel target = $region3
    $region8: #{tpu_custom_call.1} parent=1 // loop_exit
      _
    %1392 = vsyncpa [#allocation3], 1
    %s1393 = scalar_lea.sflag [#allocation3], 1
    %1394 = vsyncpa %s1393, 1
    %1395 = vsyncpa [#allocation6], 1
    %s1396 = scalar_lea.sflag [#allocation6], 1
    %1397 = vsyncpa %s1396, 1
    %1398 = vsyncpa [#allocation9], 1
    %1399 = vsyncpa [#allocation4], 1
    %s1400 = scalar_lea.sflag [#allocation4], 1
    %1401 = vsyncpa %s1400, 1
    %1402 = vsyncpa [#allocation13], 1
    %s1403 = scalar_lea.sflag [#allocation13], 1
    %1404 = vsyncpa %s1403, 1

</llo_original>
